<compile_context>
chip_gen: v6e
topology: v6e:2x2x1
jax: 0.10.0
libtpu: 0.0.40
codegen_flags: <defaults>
</compile_context>

<pallas_src>
import math

import jax
import jax.numpy as jnp
from jax.experimental import pallas as pl
from jax.experimental.pallas import tpu as pltpu

# Small, self-consistent config (hidden must be divisible by heads).
B, T, C = 2, 16, 128          # batch, seq, hidden_size
H = 4                          # num_attention_heads
HD = C // H                    # head dim
HT = H * T                     # stacked-head row count
BITS = 64                      # RambutanMLP "bits"
NEXP = 4                       # Hexperts (top-k)
EPS = 1e-5                     # layernorm_eps
NEG = -1e30                    # finite "minus infinity" (NaN-safe masking)

assert C % H == 0
assert T & (T - 1) == 0        # bitwise block-mask below assumes power-of-two T


def rambutan_slice_kernel(x_ref, ln1g_ref, ln1b_ref, wqkv_ref, wproj_ref,
                          ln2g_ref, ln2b_ref, wa_ref, ba_ref, emb_ref,
                          waggr_ref, baggr_ref, out_ref):
    x = x_ref[0]                                   # (T, C)

    def layer_norm(h, g_ref, b_ref):
        mu = jnp.mean(h, axis=-1, keepdims=True)
        hc = h - mu
        var = jnp.mean(hc * hc, axis=-1, keepdims=True)
        return hc * jax.lax.rsqrt(var + EPS) * g_ref[...] + b_ref[...]

    # ---------------- attention branch ----------------
    xn = layer_norm(x, ln1g_ref, ln1b_ref)
    # wqkv already has 1/sqrt(HD) folded into its Q columns.
    qkv = jnp.dot(xn, wqkv_ref[...], preferred_element_type=jnp.float32)   # (T, 3C)

    def stack_heads(base):
        # (T, H*HD) columns -> (H*T, HD) rows (head-major blocks of T rows).
        return jnp.concatenate(
            [qkv[:, base + h * HD: base + (h + 1) * HD] for h in range(H)], axis=0)

    q = stack_heads(0)          # (HT, HD)
    k = stack_heads(C)          # (HT, HD)
    v = stack_heads(2 * C)      # (HT, HD)

    # One score matmul for all heads; contract last dims (no explicit k.T).
    s = jax.lax.dot_general(q, k, (((1,), (1,)), ((), ())),
                            preferred_element_type=jnp.float32)            # (HT, HT)

    row = jax.lax.broadcasted_iota(jnp.int32, (HT, HT), 0)
    col = jax.lax.broadcasted_iota(jnp.int32, (HT, HT), 1)
    same_head = (row ^ col) < T                      # same T-sized block (T pow2)
    causal = (col & (T - 1)) <= (row & (T - 1))      # causal within the block
    s = jnp.where(same_head & causal, s, NEG)

    s = s - jnp.max(s, axis=-1, keepdims=True)
    p = jnp.exp(s)                                   # masked entries -> exactly 0
    p = p / jnp.sum(p, axis=-1, keepdims=True)

    y = jnp.dot(p, v, preferred_element_type=jnp.float32)                  # (HT, HD)
    # Un-stack heads back to (T, C) for a single lane-dense projection.
    y = jnp.concatenate([y[h * T:(h + 1) * T, :] for h in range(H)], axis=-1)
    attn = jnp.dot(y, wproj_ref[...], preferred_element_type=jnp.float32)  # (T, C)
    x1 = x + attn                                                          # residual 1

    # ---------------- Rambutan MLP branch ----------------
    xn2 = layer_norm(x1, ln2g_ref, ln2b_ref)
    logits = jnp.dot(xn2, wa_ref[...], preferred_element_type=jnp.float32) + ba_ref[...]
    logits = logits - jnp.max(logits, axis=-1, keepdims=True)
    e = jnp.exp(logits)
    hc = e / jnp.sum(e, axis=-1, keepdims=True)                            # (T, BITS)

    # Top-k (k=NEXP) via iterative max + masked argmax; accumulate a weighted
    # one-hot matrix and hit the expert table with ONE matmul afterwards.
    iota_bits = jax.lax.broadcasted_iota(jnp.int32, (T, BITS), 1)
    combined = jnp.zeros((T, BITS), jnp.float32)
    work = hc
    for j in range(NEXP):
        m = jnp.max(work, axis=-1, keepdims=True)                          # top value
        idx = jnp.min(jnp.where(work == m, iota_bits, BITS),
                      axis=-1, keepdims=True)                              # top index
        sel = iota_bits == idx
        combined = combined + jnp.where(sel, m * waggr_ref[j], 0.0)        # SMEM scalar
        work = jnp.where(sel, NEG, work)

    agg = jnp.dot(combined, emb_ref[...],
                  preferred_element_type=jnp.float32) + baggr_ref[0]       # (T, C)
    out_ref[0] = x1 + xn2 * agg                                            # residual 2


def _vmem_full_spec(a):
    nd = a.ndim
    return pl.BlockSpec(a.shape, lambda b, _nd=nd: (0,) * _nd)


@jax.jit
def rambutan_slice(x, ln1g, ln1b, wqkv, wproj, ln2g, ln2b, wa, ba, emb, waggr, baggr):
    # Fold the attention scale into the (constant) Q columns of the QKV weight.
    wqkv_s = wqkv.at[:, :C].multiply(1.0 / math.sqrt(HD))
    waggr_v = waggr.reshape(NEXP)      # SMEM scalars
    baggr_v = baggr.reshape(1)         # SMEM scalar

    vmem_ws = (ln1g, ln1b, wqkv_s, wproj, ln2g, ln2b, wa, ba, emb)
    in_specs = ([pl.BlockSpec((1, T, C), lambda b: (b, 0, 0))]
                + [_vmem_full_spec(w) for w in vmem_ws]
                + [pl.BlockSpec(memory_space=pltpu.MemorySpace.SMEM)] * 2)

    return pl.pallas_call(
        rambutan_slice_kernel,
        out_shape=jax.ShapeDtypeStruct((B, T, C), jnp.float32),
        grid_spec=pltpu.PrefetchScalarGridSpec(
            num_scalar_prefetch=0,
            grid=(B,),
            in_specs=in_specs,
            out_specs=pl.BlockSpec((1, T, C), lambda b: (b, 0, 0)),
        ),
        # "parallel" lets v7x shard the two batch elements over its 2 TCs;
        # on v5e/v6e (1 TC) the second grid step only costs ~0.35us.
        compiler_params=pltpu.CompilerParams(dimension_semantics=("parallel",)),
    )(x, *vmem_ws, waggr_v, baggr_v)


def reference(x, ln1g, ln1b, wqkv, wproj, ln2g, ln2b, wa, ba, emb, waggr, baggr):
    """Pure-JAX reference of RambutanSlice.forward (eval mode, no rotary)."""
    def ln(h, g, b):
        mu = h.mean(-1, keepdims=True)
        var = ((h - mu) ** 2).mean(-1, keepdims=True)
        return (h - mu) / jnp.sqrt(var + EPS) * g + b

    xn = ln(x, ln1g, ln1b)
    qkv = xn @ wqkv
    q, k, v = jnp.split(qkv, 3, axis=-1)
    sh = lambda t: t.reshape(B, T, H, HD).transpose(0, 2, 1, 3)
    q, k, v = sh(q), sh(k), sh(v)
    s = jnp.einsum('bhqd,bhkd->bhqk', q, k) / math.sqrt(HD)
    causal = jnp.tril(jnp.ones((T, T), bool))
    s = jnp.where(causal, s, -jnp.inf)
    p = jax.nn.softmax(s, axis=-1)
    y = jnp.einsum('bhqk,bhkd->bhqd', p, v).transpose(0, 2, 1, 3).reshape(B, T, C)
    x1 = x + y @ wproj

    xn2 = ln(x1, ln2g, ln2b)
    hc = jax.nn.softmax(xn2 @ wa + ba, axis=-1)
    vals, idx = jax.lax.top_k(hc, NEXP)
    h_emb = vals[..., None] * emb[idx]                      # (B, T, NEXP, C)
    out = jnp.einsum('btjc,j->btc', h_emb, waggr[0]) + baggr[0, 0]
    return x1 + xn2 * out


if __name__ == "__main__":
    key = jax.random.PRNGKey(0)
    ks = jax.random.split(key, 9)

    x = jax.random.normal(ks[0], (B, T, C), jnp.float32)

    # Deterministic parameter init (shapes follow the PyTorch module __init__).
    ln1g = jnp.ones((1, C), jnp.float32)
    ln1b = jnp.zeros((1, C), jnp.float32)
    ln2g = jnp.ones((1, C), jnp.float32)
    ln2b = jnp.zeros((1, C), jnp.float32)
    wqkv = jax.random.normal(ks[1], (C, 3 * C), jnp.float32) * 0.05   # c_attn (no bias)
    wproj = jax.random.normal(ks[2], (C, C), jnp.float32) * 0.05      # c_proj (no bias)
    wa = jax.random.normal(ks[3], (C, BITS), jnp.float32) * 0.05      # A1_c_w weight
    ba = jax.random.normal(ks[4], (1, BITS), jnp.float32) * 0.05      # A1_c_w bias
    emb = jax.random.normal(ks[5], (BITS, C), jnp.float32) * 0.05     # Hexpertemb
    waggr = jax.random.normal(ks[6], (1, NEXP), jnp.float32) * 0.5    # expert_aggr weight
    baggr = jax.random.normal(ks[7], (1, 1), jnp.float32) * 0.5       # expert_aggr bias

    args = (x, ln1g, ln1b, wqkv, wproj, ln2g, ln2b, wa, ba, emb, waggr, baggr)

    out = rambutan_slice(*args)
    out = jax.block_until_ready(out)

    ref = reference(*args)
    assert out.shape == (B, T, C) and out.dtype == jnp.float32
    assert bool(jnp.allclose(out, ref, rtol=1e-4, atol=2e-4)), "mismatch vs reference"

    print("KERNEL_OK")
</pallas_src>

<mosaic_0001>
module attributes {stable_mosaic.version = 11 : i64} {
  func.func @rambutan_slice_kernel(%arg0: i32, %arg1: memref<1x16x128xf32, #tpu.memory_space<vmem>>, %arg2: memref<1x128xf32, #tpu.memory_space<vmem>>, %arg3: memref<1x128xf32, #tpu.memory_space<vmem>>, %arg4: memref<128x384xf32, #tpu.memory_space<vmem>>, %arg5: memref<128x128xf32, #tpu.memory_space<vmem>>, %arg6: memref<1x128xf32, #tpu.memory_space<vmem>>, %arg7: memref<1x128xf32, #tpu.memory_space<vmem>>, %arg8: memref<128x64xf32, #tpu.memory_space<vmem>>, %arg9: memref<1x64xf32, #tpu.memory_space<vmem>>, %arg10: memref<64x128xf32, #tpu.memory_space<vmem>>, %arg11: memref<4xf32, #tpu.memory_space<smem>>, %arg12: memref<1xf32, #tpu.memory_space<smem>>, %arg13: memref<1x16x128xf32, #tpu.memory_space<vmem>>) attributes {dimension_semantics = [#tpu.dimension_semantics<parallel>], iteration_bounds = array<i64: 2>, scalar_prefetch = 0 : i64, scratch_operands = 0 : i64, tpu.core_type = #tpu.core_type<tc>, window_params = [{transform_indices = @transform_0, window_bounds = array<i64: 1, 16, 128>}, {pipeline_mode = #tpu.pipeline_mode<synchronous>, transform_indices = @transform_1, window_bounds = array<i64: 1, 128>}, {pipeline_mode = #tpu.pipeline_mode<synchronous>, transform_indices = @transform_2, window_bounds = array<i64: 1, 128>}, {pipeline_mode = #tpu.pipeline_mode<synchronous>, transform_indices = @transform_3, window_bounds = array<i64: 128, 384>}, {pipeline_mode = #tpu.pipeline_mode<synchronous>, transform_indices = @transform_4, window_bounds = array<i64: 128, 128>}, {pipeline_mode = #tpu.pipeline_mode<synchronous>, transform_indices = @transform_5, window_bounds = array<i64: 1, 128>}, {pipeline_mode = #tpu.pipeline_mode<synchronous>, transform_indices = @transform_6, window_bounds = array<i64: 1, 128>}, {pipeline_mode = #tpu.pipeline_mode<synchronous>, transform_indices = @transform_7, window_bounds = array<i64: 128, 64>}, {pipeline_mode = #tpu.pipeline_mode<synchronous>, transform_indices = @transform_8, window_bounds = array<i64: 1, 64>}, {pipeline_mode = #tpu.pipeline_mode<synchronous>, transform_indices = @transform_9, window_bounds = array<i64: 64, 128>}, {transform_indices = @transform_10, window_bounds = array<i64: 4>}, {transform_indices = @transform_11, window_bounds = array<i64: 1>}, {transform_indices = @transform_12, window_bounds = array<i64: 1, 16, 128>}]} {
    %c0 = arith.constant 0 : index
    %c0_0 = arith.constant 0 : index
    %c0_1 = arith.constant 0 : index
    %0 = vector.load %arg1[%c0, %c0_0, %c0_1] : memref<1x16x128xf32, #tpu.memory_space<vmem>>, vector<1x16x128xf32>
    %1 = vector.shape_cast %0 : vector<1x16x128xf32> to vector<16x128xf32>
    %cst = arith.constant dense<0.000000e+00> : vector<16xf32>
    %2 = vector.multi_reduction <add>, %1, %cst [1] : vector<16x128xf32> to vector<16xf32>
    %3 = vector.shape_cast %2 : vector<16xf32> to vector<16x1xf32>
    %cst_2 = arith.constant 1.280000e+02 : f32
    %4 = vector.broadcast %cst_2 : f32 to vector<16x1xf32>
    %5 = arith.divf %3, %4 : vector<16x1xf32>
    %6 = vector.broadcast %5 : vector<16x1xf32> to vector<16x128xf32>
    %7 = arith.subf %1, %6 : vector<16x128xf32>
    %8 = arith.mulf %7, %7 : vector<16x128xf32>
    %cst_3 = arith.constant dense<0.000000e+00> : vector<16xf32>
    %9 = vector.multi_reduction <add>, %8, %cst_3 [1] : vector<16x128xf32> to vector<16xf32>
    %10 = vector.shape_cast %9 : vector<16xf32> to vector<16x1xf32>
    %cst_4 = arith.constant 1.280000e+02 : f32
    %11 = vector.broadcast %cst_4 : f32 to vector<16x1xf32>
    %12 = arith.divf %10, %11 : vector<16x1xf32>
    %cst_5 = arith.constant 9.99999974E-6 : f32
    %13 = vector.broadcast %cst_5 : f32 to vector<16x1xf32>
    %14 = arith.addf %12, %13 : vector<16x1xf32>
    %15 = math.rsqrt %14 : vector<16x1xf32>
    %16 = vector.broadcast %15 : vector<16x1xf32> to vector<16x128xf32>
    %17 = arith.mulf %7, %16 : vector<16x128xf32>
    %c0_6 = arith.constant 0 : index
    %c0_7 = arith.constant 0 : index
    %18 = vector.load %arg2[%c0_6, %c0_7] : memref<1x128xf32, #tpu.memory_space<vmem>>, vector<1x128xf32>
    %19 = vector.broadcast %18 : vector<1x128xf32> to vector<16x128xf32>
    %20 = arith.mulf %17, %19 : vector<16x128xf32>
    %c0_8 = arith.constant 0 : index
    %c0_9 = arith.constant 0 : index
    %21 = vector.load %arg3[%c0_8, %c0_9] : memref<1x128xf32, #tpu.memory_space<vmem>>, vector<1x128xf32>
    %22 = vector.broadcast %21 : vector<1x128xf32> to vector<16x128xf32>
    %23 = arith.addf %20, %22 : vector<16x128xf32>
    %c0_10 = arith.constant 0 : index
    %c0_11 = arith.constant 0 : index
    %24 = vector.load %arg4[%c0_10, %c0_11] : memref<128x384xf32, #tpu.memory_space<vmem>>, vector<128x384xf32>
    %cst_12 = arith.constant dense<0.000000e+00> : vector<16x384xf32>
    %25 = tpu.matmul %23, %24, %cst_12 {dimension_numbers = #tpu.dot_dimension_numbers<[1], [0], [0], [1], [0, 0, 1, 1], [], []>} : vector<16x128xf32>, vector<128x384xf32>, vector<16x384xf32> -> vector<16x384xf32>
    %26 = vector.extract_strided_slice %25 {offsets = [0, 0], sizes = [16, 32], strides = [1, 1]} : vector<16x384xf32> to vector<16x32xf32>
    %27 = vector.extract_strided_slice %25 {offsets = [0, 32], sizes = [16, 32], strides = [1, 1]} : vector<16x384xf32> to vector<16x32xf32>
    %28 = vector.extract_strided_slice %25 {offsets = [0, 64], sizes = [16, 32], strides = [1, 1]} : vector<16x384xf32> to vector<16x32xf32>
    %29 = vector.extract_strided_slice %25 {offsets = [0, 96], sizes = [16, 32], strides = [1, 1]} : vector<16x384xf32> to vector<16x32xf32>
    %30 = tpu.concatenate %26, %27, %28, %29 in 0 : vector<16x32xf32>, vector<16x32xf32>, vector<16x32xf32>, vector<16x32xf32> -> vector<64x32xf32>
    %31 = vector.extract_strided_slice %25 {offsets = [0, 128], sizes = [16, 32], strides = [1, 1]} : vector<16x384xf32> to vector<16x32xf32>
    %32 = vector.extract_strided_slice %25 {offsets = [0, 160], sizes = [16, 32], strides = [1, 1]} : vector<16x384xf32> to vector<16x32xf32>
    %33 = vector.extract_strided_slice %25 {offsets = [0, 192], sizes = [16, 32], strides = [1, 1]} : vector<16x384xf32> to vector<16x32xf32>
    %34 = vector.extract_strided_slice %25 {offsets = [0, 224], sizes = [16, 32], strides = [1, 1]} : vector<16x384xf32> to vector<16x32xf32>
    %35 = tpu.concatenate %31, %32, %33, %34 in 0 : vector<16x32xf32>, vector<16x32xf32>, vector<16x32xf32>, vector<16x32xf32> -> vector<64x32xf32>
    %36 = vector.extract_strided_slice %25 {offsets = [0, 256], sizes = [16, 32], strides = [1, 1]} : vector<16x384xf32> to vector<16x32xf32>
    %37 = vector.extract_strided_slice %25 {offsets = [0, 288], sizes = [16, 32], strides = [1, 1]} : vector<16x384xf32> to vector<16x32xf32>
    %38 = vector.extract_strided_slice %25 {offsets = [0, 320], sizes = [16, 32], strides = [1, 1]} : vector<16x384xf32> to vector<16x32xf32>
    %39 = vector.extract_strided_slice %25 {offsets = [0, 352], sizes = [16, 32], strides = [1, 1]} : vector<16x384xf32> to vector<16x32xf32>
    %40 = tpu.concatenate %36, %37, %38, %39 in 0 : vector<16x32xf32>, vector<16x32xf32>, vector<16x32xf32>, vector<16x32xf32> -> vector<64x32xf32>
    %cst_13 = arith.constant dense<0.000000e+00> : vector<64x64xf32>
    %41 = tpu.matmul %30, %35, %cst_13 {dimension_numbers = #tpu.dot_dimension_numbers<[1], [1], [0], [0], [0, 0, 1, 0], [], []>} : vector<64x32xf32>, vector<64x32xf32>, vector<64x64xf32> -> vector<64x64xf32>
    %42 = tpu.iota {dimensions = array<i32: 0>} : vector<64x64xi32>
    %43 = tpu.iota {dimensions = array<i32: 1>} : vector<64x64xi32>
    %44 = arith.xori %42, %43 : vector<64x64xi32>
    %c16_i32 = arith.constant 16 : i32
    %45 = vector.broadcast %c16_i32 : i32 to vector<64x64xi32>
    %46 = arith.cmpi slt, %44, %45 : vector<64x64xi32>
    %c15_i32 = arith.constant 15 : i32
    %47 = vector.broadcast %c15_i32 : i32 to vector<64x64xi32>
    %48 = arith.andi %43, %47 : vector<64x64xi32>
    %c15_i32_14 = arith.constant 15 : i32
    %49 = vector.broadcast %c15_i32_14 : i32 to vector<64x64xi32>
    %50 = arith.andi %42, %49 : vector<64x64xi32>
    %51 = arith.cmpi sle, %48, %50 : vector<64x64xi32>
    %52 = arith.andi %46, %51 : vector<64x64xi1>
    %cst_15 = arith.constant -1.000000e+30 : f32
    %53 = vector.broadcast %cst_15 : f32 to vector<64x64xf32>
    %54 = arith.select %52, %41, %53 : vector<64x64xi1>, vector<64x64xf32>
    %cst_16 = arith.constant dense<0xFF800000> : vector<64xf32>
    %55 = vector.multi_reduction <maximumf>, %54, %cst_16 [1] : vector<64x64xf32> to vector<64xf32>
    %56 = vector.shape_cast %55 : vector<64xf32> to vector<64x1xf32>
    %57 = vector.broadcast %56 : vector<64x1xf32> to vector<64x64xf32>
    %58 = arith.subf %54, %57 : vector<64x64xf32>
    %59 = math.exp %58 : vector<64x64xf32>
    %cst_17 = arith.constant dense<0.000000e+00> : vector<64xf32>
    %60 = vector.multi_reduction <add>, %59, %cst_17 [1] : vector<64x64xf32> to vector<64xf32>
    %61 = vector.shape_cast %60 : vector<64xf32> to vector<64x1xf32>
    %62 = vector.broadcast %61 : vector<64x1xf32> to vector<64x64xf32>
    %63 = arith.divf %59, %62 : vector<64x64xf32>
    %cst_18 = arith.constant dense<0.000000e+00> : vector<64x32xf32>
    %64 = tpu.matmul %63, %40, %cst_18 {dimension_numbers = #tpu.dot_dimension_numbers<[1], [0], [0], [1], [0, 0, 1, 1], [], []>} : vector<64x64xf32>, vector<64x32xf32>, vector<64x32xf32> -> vector<64x32xf32>
    %65 = vector.extract_strided_slice %64 {offsets = [0, 0], sizes = [16, 32], strides = [1, 1]} : vector<64x32xf32> to vector<16x32xf32>
    %66 = vector.extract_strided_slice %64 {offsets = [16, 0], sizes = [16, 32], strides = [1, 1]} : vector<64x32xf32> to vector<16x32xf32>
    %67 = vector.extract_strided_slice %64 {offsets = [32, 0], sizes = [16, 32], strides = [1, 1]} : vector<64x32xf32> to vector<16x32xf32>
    %68 = vector.extract_strided_slice %64 {offsets = [48, 0], sizes = [16, 32], strides = [1, 1]} : vector<64x32xf32> to vector<16x32xf32>
    %69 = tpu.concatenate %65, %66, %67, %68 in 1 : vector<16x32xf32>, vector<16x32xf32>, vector<16x32xf32>, vector<16x32xf32> -> vector<16x128xf32>
    %c0_19 = arith.constant 0 : index
    %c0_20 = arith.constant 0 : index
    %70 = vector.load %arg5[%c0_19, %c0_20] : memref<128x128xf32, #tpu.memory_space<vmem>>, vector<128x128xf32>
    %cst_21 = arith.constant dense<0.000000e+00> : vector<16x128xf32>
    %71 = tpu.matmul %69, %70, %cst_21 {dimension_numbers = #tpu.dot_dimension_numbers<[1], [0], [0], [1], [0, 0, 1, 1], [], []>} : vector<16x128xf32>, vector<128x128xf32>, vector<16x128xf32> -> vector<16x128xf32>
    %72 = arith.addf %1, %71 : vector<16x128xf32>
    %cst_22 = arith.constant dense<0.000000e+00> : vector<16xf32>
    %73 = vector.multi_reduction <add>, %72, %cst_22 [1] : vector<16x128xf32> to vector<16xf32>
    %74 = vector.shape_cast %73 : vector<16xf32> to vector<16x1xf32>
    %cst_23 = arith.constant 1.280000e+02 : f32
    %75 = vector.broadcast %cst_23 : f32 to vector<16x1xf32>
    %76 = arith.divf %74, %75 : vector<16x1xf32>
    %77 = vector.broadcast %76 : vector<16x1xf32> to vector<16x128xf32>
    %78 = arith.subf %72, %77 : vector<16x128xf32>
    %79 = arith.mulf %78, %78 : vector<16x128xf32>
    %cst_24 = arith.constant dense<0.000000e+00> : vector<16xf32>
    %80 = vector.multi_reduction <add>, %79, %cst_24 [1] : vector<16x128xf32> to vector<16xf32>
    %81 = vector.shape_cast %80 : vector<16xf32> to vector<16x1xf32>
    %cst_25 = arith.constant 1.280000e+02 : f32
    %82 = vector.broadcast %cst_25 : f32 to vector<16x1xf32>
    %83 = arith.divf %81, %82 : vector<16x1xf32>
    %cst_26 = arith.constant 9.99999974E-6 : f32
    %84 = vector.broadcast %cst_26 : f32 to vector<16x1xf32>
    %85 = arith.addf %83, %84 : vector<16x1xf32>
    %86 = math.rsqrt %85 : vector<16x1xf32>
    %87 = vector.broadcast %86 : vector<16x1xf32> to vector<16x128xf32>
    %88 = arith.mulf %78, %87 : vector<16x128xf32>
    %c0_27 = arith.constant 0 : index
    %c0_28 = arith.constant 0 : index
    %89 = vector.load %arg6[%c0_27, %c0_28] : memref<1x128xf32, #tpu.memory_space<vmem>>, vector<1x128xf32>
    %90 = vector.broadcast %89 : vector<1x128xf32> to vector<16x128xf32>
    %91 = arith.mulf %88, %90 : vector<16x128xf32>
    %c0_29 = arith.constant 0 : index
    %c0_30 = arith.constant 0 : index
    %92 = vector.load %arg7[%c0_29, %c0_30] : memref<1x128xf32, #tpu.memory_space<vmem>>, vector<1x128xf32>
    %93 = vector.broadcast %92 : vector<1x128xf32> to vector<16x128xf32>
    %94 = arith.addf %91, %93 : vector<16x128xf32>
    %c0_31 = arith.constant 0 : index
    %c0_32 = arith.constant 0 : index
    %95 = vector.load %arg8[%c0_31, %c0_32] : memref<128x64xf32, #tpu.memory_space<vmem>>, vector<128x64xf32>
    %cst_33 = arith.constant dense<0.000000e+00> : vector<16x64xf32>
    %96 = tpu.matmul %94, %95, %cst_33 {dimension_numbers = #tpu.dot_dimension_numbers<[1], [0], [0], [1], [0, 0, 1, 1], [], []>} : vector<16x128xf32>, vector<128x64xf32>, vector<16x64xf32> -> vector<16x64xf32>
    %c0_34 = arith.constant 0 : index
    %c0_35 = arith.constant 0 : index
    %97 = vector.load %arg9[%c0_34, %c0_35] : memref<1x64xf32, #tpu.memory_space<vmem>>, vector<1x64xf32>
    %98 = vector.broadcast %97 : vector<1x64xf32> to vector<16x64xf32>
    %99 = arith.addf %96, %98 : vector<16x64xf32>
    %cst_36 = arith.constant dense<0xFF800000> : vector<16xf32>
    %100 = vector.multi_reduction <maximumf>, %99, %cst_36 [1] : vector<16x64xf32> to vector<16xf32>
    %101 = vector.shape_cast %100 : vector<16xf32> to vector<16x1xf32>
    %102 = vector.broadcast %101 : vector<16x1xf32> to vector<16x64xf32>
    %103 = arith.subf %99, %102 : vector<16x64xf32>
    %104 = math.exp %103 : vector<16x64xf32>
    %cst_37 = arith.constant dense<0.000000e+00> : vector<16xf32>
    %105 = vector.multi_reduction <add>, %104, %cst_37 [1] : vector<16x64xf32> to vector<16xf32>
    %106 = vector.shape_cast %105 : vector<16xf32> to vector<16x1xf32>
    %107 = vector.broadcast %106 : vector<16x1xf32> to vector<16x64xf32>
    %108 = arith.divf %104, %107 : vector<16x64xf32>
    %109 = tpu.iota {dimensions = array<i32: 1>} : vector<16x64xi32>
    %cst_38 = arith.constant 0.000000e+00 : f32
    %110 = vector.broadcast %cst_38 : f32 to vector<16x64xf32>
    %cst_39 = arith.constant dense<0xFF800000> : vector<16xf32>
    %111 = vector.multi_reduction <maximumf>, %108, %cst_39 [1] : vector<16x64xf32> to vector<16xf32>
    %112 = vector.shape_cast %111 : vector<16xf32> to vector<16x1xf32>
    %113 = vector.broadcast %112 : vector<16x1xf32> to vector<16x64xf32>
    %114 = arith.cmpf oeq, %108, %113 : vector<16x64xf32>
    %c64_i32 = arith.constant 64 : i32
    %115 = vector.broadcast %c64_i32 : i32 to vector<16x64xi32>
    %116 = arith.select %114, %109, %115 : vector<16x64xi1>, vector<16x64xi32>
    %cst_40 = arith.constant dense<2147483647> : vector<16xi32>
    %117 = vector.multi_reduction <minsi>, %116, %cst_40 [1] : vector<16x64xi32> to vector<16xi32>
    %118 = vector.shape_cast %117 : vector<16xi32> to vector<16x1xi32>
    %119 = vector.broadcast %118 : vector<16x1xi32> to vector<16x64xi32>
    %120 = arith.cmpi eq, %109, %119 : vector<16x64xi32>
    %c0_41 = arith.constant 0 : index
    %121 = memref.load %arg11[%c0_41] : memref<4xf32, #tpu.memory_space<smem>>
    %122 = vector.broadcast %121 : f32 to vector<16x1xf32>
    %123 = arith.mulf %112, %122 : vector<16x1xf32>
    %cst_42 = arith.constant 0.000000e+00 : f32
    %124 = vector.shape_cast %123 : vector<16x1xf32> to vector<16x1xf32>
    %125 = vector.broadcast %124 : vector<16x1xf32> to vector<16x64xf32>
    %126 = vector.broadcast %cst_42 : f32 to vector<16x64xf32>
    %127 = arith.select %120, %125, %126 : vector<16x64xi1>, vector<16x64xf32>
    %128 = arith.addf %110, %127 : vector<16x64xf32>
    %cst_43 = arith.constant -1.000000e+30 : f32
    %129 = vector.broadcast %cst_43 : f32 to vector<16x64xf32>
    %130 = arith.select %120, %129, %108 : vector<16x64xi1>, vector<16x64xf32>
    %cst_44 = arith.constant dense<0xFF800000> : vector<16xf32>
    %131 = vector.multi_reduction <maximumf>, %130, %cst_44 [1] : vector<16x64xf32> to vector<16xf32>
    %132 = vector.shape_cast %131 : vector<16xf32> to vector<16x1xf32>
    %133 = vector.broadcast %132 : vector<16x1xf32> to vector<16x64xf32>
    %134 = arith.cmpf oeq, %130, %133 : vector<16x64xf32>
    %c64_i32_45 = arith.constant 64 : i32
    %135 = vector.broadcast %c64_i32_45 : i32 to vector<16x64xi32>
    %136 = arith.select %134, %109, %135 : vector<16x64xi1>, vector<16x64xi32>
    %cst_46 = arith.constant dense<2147483647> : vector<16xi32>
    %137 = vector.multi_reduction <minsi>, %136, %cst_46 [1] : vector<16x64xi32> to vector<16xi32>
    %138 = vector.shape_cast %137 : vector<16xi32> to vector<16x1xi32>
    %139 = vector.broadcast %138 : vector<16x1xi32> to vector<16x64xi32>
    %140 = arith.cmpi eq, %109, %139 : vector<16x64xi32>
    %c1 = arith.constant 1 : index
    %141 = memref.load %arg11[%c1] : memref<4xf32, #tpu.memory_space<smem>>
    %142 = vector.broadcast %141 : f32 to vector<16x1xf32>
    %143 = arith.mulf %132, %142 : vector<16x1xf32>
    %cst_47 = arith.constant 0.000000e+00 : f32
    %144 = vector.shape_cast %143 : vector<16x1xf32> to vector<16x1xf32>
    %145 = vector.broadcast %144 : vector<16x1xf32> to vector<16x64xf32>
    %146 = vector.broadcast %cst_47 : f32 to vector<16x64xf32>
    %147 = arith.select %140, %145, %146 : vector<16x64xi1>, vector<16x64xf32>
    %148 = arith.addf %128, %147 : vector<16x64xf32>
    %cst_48 = arith.constant -1.000000e+30 : f32
    %149 = vector.broadcast %cst_48 : f32 to vector<16x64xf32>
    %150 = arith.select %140, %149, %130 : vector<16x64xi1>, vector<16x64xf32>
    %cst_49 = arith.constant dense<0xFF800000> : vector<16xf32>
    %151 = vector.multi_reduction <maximumf>, %150, %cst_49 [1] : vector<16x64xf32> to vector<16xf32>
    %152 = vector.shape_cast %151 : vector<16xf32> to vector<16x1xf32>
    %153 = vector.broadcast %152 : vector<16x1xf32> to vector<16x64xf32>
    %154 = arith.cmpf oeq, %150, %153 : vector<16x64xf32>
    %c64_i32_50 = arith.constant 64 : i32
    %155 = vector.broadcast %c64_i32_50 : i32 to vector<16x64xi32>
    %156 = arith.select %154, %109, %155 : vector<16x64xi1>, vector<16x64xi32>
    %cst_51 = arith.constant dense<2147483647> : vector<16xi32>
    %157 = vector.multi_reduction <minsi>, %156, %cst_51 [1] : vector<16x64xi32> to vector<16xi32>
    %158 = vector.shape_cast %157 : vector<16xi32> to vector<16x1xi32>
    %159 = vector.broadcast %158 : vector<16x1xi32> to vector<16x64xi32>
    %160 = arith.cmpi eq, %109, %159 : vector<16x64xi32>
    %c2 = arith.constant 2 : index
    %161 = memref.load %arg11[%c2] : memref<4xf32, #tpu.memory_space<smem>>
    %162 = vector.broadcast %161 : f32 to vector<16x1xf32>
    %163 = arith.mulf %152, %162 : vector<16x1xf32>
    %cst_52 = arith.constant 0.000000e+00 : f32
    %164 = vector.shape_cast %163 : vector<16x1xf32> to vector<16x1xf32>
    %165 = vector.broadcast %164 : vector<16x1xf32> to vector<16x64xf32>
    %166 = vector.broadcast %cst_52 : f32 to vector<16x64xf32>
    %167 = arith.select %160, %165, %166 : vector<16x64xi1>, vector<16x64xf32>
    %168 = arith.addf %148, %167 : vector<16x64xf32>
    %cst_53 = arith.constant -1.000000e+30 : f32
    %169 = vector.broadcast %cst_53 : f32 to vector<16x64xf32>
    %170 = arith.select %160, %169, %150 : vector<16x64xi1>, vector<16x64xf32>
    %cst_54 = arith.constant dense<0xFF800000> : vector<16xf32>
    %171 = vector.multi_reduction <maximumf>, %170, %cst_54 [1] : vector<16x64xf32> to vector<16xf32>
    %172 = vector.shape_cast %171 : vector<16xf32> to vector<16x1xf32>
    %173 = vector.broadcast %172 : vector<16x1xf32> to vector<16x64xf32>
    %174 = arith.cmpf oeq, %170, %173 : vector<16x64xf32>
    %c64_i32_55 = arith.constant 64 : i32
    %175 = vector.broadcast %c64_i32_55 : i32 to vector<16x64xi32>
    %176 = arith.select %174, %109, %175 : vector<16x64xi1>, vector<16x64xi32>
    %cst_56 = arith.constant dense<2147483647> : vector<16xi32>
    %177 = vector.multi_reduction <minsi>, %176, %cst_56 [1] : vector<16x64xi32> to vector<16xi32>
    %178 = vector.shape_cast %177 : vector<16xi32> to vector<16x1xi32>
    %179 = vector.broadcast %178 : vector<16x1xi32> to vector<16x64xi32>
    %180 = arith.cmpi eq, %109, %179 : vector<16x64xi32>
    %c3 = arith.constant 3 : index
    %181 = memref.load %arg11[%c3] : memref<4xf32, #tpu.memory_space<smem>>
    %182 = vector.broadcast %181 : f32 to vector<16x1xf32>
    %183 = arith.mulf %172, %182 : vector<16x1xf32>
    %cst_57 = arith.constant 0.000000e+00 : f32
    %184 = vector.shape_cast %183 : vector<16x1xf32> to vector<16x1xf32>
    %185 = vector.broadcast %184 : vector<16x1xf32> to vector<16x64xf32>
    %186 = vector.broadcast %cst_57 : f32 to vector<16x64xf32>
    %187 = arith.select %180, %185, %186 : vector<16x64xi1>, vector<16x64xf32>
    %188 = arith.addf %168, %187 : vector<16x64xf32>
    %c0_58 = arith.constant 0 : index
    %c0_59 = arith.constant 0 : index
    %189 = vector.load %arg10[%c0_58, %c0_59] : memref<64x128xf32, #tpu.memory_space<vmem>>, vector<64x128xf32>
    %cst_60 = arith.constant dense<0.000000e+00> : vector<16x128xf32>
    %190 = tpu.matmul %188, %189, %cst_60 {dimension_numbers = #tpu.dot_dimension_numbers<[1], [0], [0], [1], [0, 0, 1, 1], [], []>} : vector<16x64xf32>, vector<64x128xf32>, vector<16x128xf32> -> vector<16x128xf32>
    %c0_61 = arith.constant 0 : index
    %191 = memref.load %arg12[%c0_61] : memref<1xf32, #tpu.memory_space<smem>>
    %192 = vector.broadcast %191 : f32 to vector<16x128xf32>
    %193 = arith.addf %190, %192 : vector<16x128xf32>
    %194 = arith.mulf %94, %193 : vector<16x128xf32>
    %195 = arith.addf %72, %194 : vector<16x128xf32>
    %c0_62 = arith.constant 0 : index
    %c0_63 = arith.constant 0 : index
    %c0_64 = arith.constant 0 : index
    %196 = vector.load %arg13[%c0_62, %c0_63, %c0_64] : memref<1x16x128xf32, #tpu.memory_space<vmem>>, vector<1x16x128xf32>
    %197 = vector.shape_cast %196 : vector<1x16x128xf32> to vector<16x128xf32>
    %198 = vector.shape_cast %195 : vector<16x128xf32> to vector<1x16x128xf32>
    tpu.vector_store %arg13[%c0_62, %c0_63, %c0_64], %198 {strides = array<i32>} : memref<1x16x128xf32, #tpu.memory_space<vmem>>, vector<1x16x128xf32>,
    return
  }
  func.func @transform_0(%arg0: i32) -> (i32, i32, i32) {
    %c0_i32 = arith.constant 0 : i32
    %c0_i32_0 = arith.constant 0 : i32
    %c0_i32_1 = arith.constant 0 : i32
    return %arg0, %c0_i32, %c0_i32_0 : i32, i32, i32
  }
  func.func @transform_1(%arg0: i32) -> (i32, i32) {
    %c0_i32 = arith.constant 0 : i32
    %c0_i32_0 = arith.constant 0 : i32
    %c0_i32_1 = arith.constant 0 : i32
    return %c0_i32, %c0_i32_0 : i32, i32
  }
  func.func @transform_2(%arg0: i32) -> (i32, i32) {
    %c0_i32 = arith.constant 0 : i32
    %c0_i32_0 = arith.constant 0 : i32
    %c0_i32_1 = arith.constant 0 : i32
    return %c0_i32, %c0_i32_0 : i32, i32
  }
  func.func @transform_3(%arg0: i32) -> (i32, i32) {
    %c0_i32 = arith.constant 0 : i32
    %c0_i32_0 = arith.constant 0 : i32
    %c0_i32_1 = arith.constant 0 : i32
    return %c0_i32, %c0_i32_0 : i32, i32
  }
  func.func @transform_4(%arg0: i32) -> (i32, i32) {
    %c0_i32 = arith.constant 0 : i32
    %c0_i32_0 = arith.constant 0 : i32
    %c0_i32_1 = arith.constant 0 : i32
    return %c0_i32, %c0_i32_0 : i32, i32
  }
  func.func @transform_5(%arg0: i32) -> (i32, i32) {
    %c0_i32 = arith.constant 0 : i32
    %c0_i32_0 = arith.constant 0 : i32
    %c0_i32_1 = arith.constant 0 : i32
    return %c0_i32, %c0_i32_0 : i32, i32
  }
  func.func @transform_6(%arg0: i32) -> (i32, i32) {
    %c0_i32 = arith.constant 0 : i32
    %c0_i32_0 = arith.constant 0 : i32
    %c0_i32_1 = arith.constant 0 : i32
    return %c0_i32, %c0_i32_0 : i32, i32
  }
  func.func @transform_7(%arg0: i32) -> (i32, i32) {
    %c0_i32 = arith.constant 0 : i32
    %c0_i32_0 = arith.constant 0 : i32
    %c0_i32_1 = arith.constant 0 : i32
    return %c0_i32, %c0_i32_0 : i32, i32
  }
  func.func @transform_8(%arg0: i32) -> (i32, i32) {
    %c0_i32 = arith.constant 0 : i32
    %c0_i32_0 = arith.constant 0 : i32
    %c0_i32_1 = arith.constant 0 : i32
    return %c0_i32, %c0_i32_0 : i32, i32
  }
  func.func @transform_9(%arg0: i32) -> (i32, i32) {
    %c0_i32 = arith.constant 0 : i32
    %c0_i32_0 = arith.constant 0 : i32
    %c0_i32_1 = arith.constant 0 : i32
    return %c0_i32, %c0_i32_0 : i32, i32
  }
  func.func @transform_10(%arg0: i32) -> i32 {
    %c0_i32 = arith.constant 0 : i32
    %c0_i32_0 = arith.constant 0 : i32
    return %c0_i32 : i32
  }
  func.func @transform_11(%arg0: i32) -> i32 {
    %c0_i32 = arith.constant 0 : i32
    %c0_i32_0 = arith.constant 0 : i32
    return %c0_i32 : i32
  }
  func.func @transform_12(%arg0: i32) -> (i32, i32, i32) {
    %c0_i32 = arith.constant 0 : i32
    %c0_i32_0 = arith.constant 0 : i32
    %c0_i32_1 = arith.constant 0 : i32
    return %arg0, %c0_i32, %c0_i32_0 : i32, i32, i32
  }
}

</mosaic_0001>

<llo_original>
// kernel: rambutan_slice.1
$region0: #{rambutan_slice.1}
  #allocation0 [shape = 'u32[]', space=smem, size = 0x4, offset = 0x4, fixed_abs, tag = 'smem constant byte address 0x4 - core index']
  #allocation1 [shape = 'u32[144,128]{1,0:T(1,128)}', space=vmem, size = 0x12000, scoped, tag = 'internal scratch']
  #allocation2 [shape = 'f32[1]{0:T(128)S(6)}', space=smem, size = 0x200, scoped, tag = 'scoped memory for rambutan_slice.1']
  %s0 = inlined_call_operand.vmem [shape: f32[2,16,128], index: 0, kind: input, shape index: {}]
  %s1 = inlined_call_operand.vmem [shape: f32[1,128], index: 1, kind: input, shape index: {}]
  %s2 = inlined_call_operand.vmem [shape: f32[1,128], index: 2, kind: input, shape index: {}]
  %s3 = inlined_call_operand.vmem [shape: f32[128,384], index: 3, kind: input, shape index: {}]
  %s4 = inlined_call_operand.vmem [shape: f32[128,128], index: 4, kind: input, shape index: {}]
  %s5 = inlined_call_operand.vmem [shape: f32[1,128], index: 5, kind: input, shape index: {}]
  %s6 = inlined_call_operand.vmem [shape: f32[1,128], index: 6, kind: input, shape index: {}]
  %s7 = inlined_call_operand.vmem [shape: f32[128,64], index: 7, kind: input, shape index: {}]
  %s8 = inlined_call_operand.vmem [shape: f32[1,64], index: 8, kind: input, shape index: {}]
  %s9 = inlined_call_operand.vmem [shape: f32[64,128], index: 9, kind: input, shape index: {}]
  %s10 = inlined_call_operand.vmem [shape: f32[4], index: 10, kind: input, shape index: {}]
  %s11 = inlined_call_operand.<no memory space> [shape: f32[1], index: 11, kind: input, shape index: {}]
  %s12 = inlined_call_operand.hbm [shape: f32[2,16,128], index: 12, kind: output, shape index: {}]
  %s13 = sld [smem:[#allocation0]]
  $region85: #{rambutan_slice.1} parent=0
    _
  %s15 = ssub.s32 1, %s13
  %s16 = scalar_select 0, %s15, %s13
  %17 = sst [smem:[#allocation2]] %s11
  $region1: #{rambutan_slice.1} parent=0
    #allocation3 [shape = 'u8[512]{0}', space=smem, size = 0x200, scoped, tag = 'input window, operand 10, single buffered']
    #allocation4 [shape = 's32[2]{0}', space=sflag, size = 0x8, scoped, tag = 'scoped memory for rambutan_slice.1']
    #allocation5 [shape = 's32[2]{0}', space=sflag, size = 0x8, scoped, tag = 'scoped memory for rambutan_slice.1']
    #allocation6 [shape = 'u8[16384]{0}', space=vmem, size = 0x4000, scoped, tag = 'output window, operand 0']
    %18 = vsyncpa [#allocation5], 0
    %19 = vsyncpa [#allocation4], 0
    %s20 = scalar_lea.sflag [#allocation4], 1
    %21 = vsyncpa %s20, 0
    loop: start=0, step=1, limit=4
    $region2: #{rambutan_slice.1} parent=1 // loop_pre_header
      _
    $region3: #{rambutan_slice.1} parent=1 // loop_header
      %s23 = sphi 0, %s27
      %p24 = scmp.ge.s32.totalorder %s23, 4
      %s33 = sphi 0, %s35
      %s36 = sphi 0, %s33
      %s37 = sphi 0, %s36
      %s53 = sphi 0, %s37
      %s57 = sphi 0, %s57
      %s59 = sphi 0, %s57
      %s60 = sphi 0, %s59
      %s74 = sphi 0, %s60
      %s78 = sphi 0, %s78
      %s80 = sphi 0, %s78
      %s81 = sphi 0, %s80
      %s95 = sphi 0, %s81
      %s99 = sphi 0, %s99
      %s101 = sphi 0, %s99
      %s102 = sphi 0, %s101
      %s116 = sphi 0, %s102
      %s120 = sphi 0, %s120
      %s122 = sphi 0, %s120
      %s123 = sphi 0, %s122
      %s137 = sphi 0, %s123
      %s141 = sphi 0, %s141
      %s143 = sphi 0, %s141
      %s144 = sphi 0, %s143
      %s158 = sphi 0, %s144
      %s162 = sphi 0, %s162
      %s164 = sphi 0, %s162
      %s165 = sphi 0, %s164
      %s179 = sphi 0, %s165
      %s183 = sphi 0, %s183
      %s185 = sphi 0, %s183
      %s186 = sphi 0, %s185
      %s200 = sphi 0, %s186
      %s204 = sphi 0, %s204
      %s206 = sphi 0, %s204
      %s207 = sphi 0, %s206
      %s221 = sphi 0, %s207
      %s225 = sphi 0, %s225
      %s227 = sphi 0, %s225
      %s228 = sphi 0, %s227
      %s242 = sphi 0, %s228
      %s246 = sphi 0, %s246
      %s248 = sphi 0, %s246
      %s249 = sphi 0, %s248
      %s263 = sphi 0, %s249
      %s267 = sphi 0, %s267
      %s269 = sphi 0, %s267
      %s270 = sphi 0, %s269
      %s284 = sphi 0, %s270
      %s290 = sphi 0, %s292
      %s293 = sphi 0, %s290
      %s294 = sphi 0, %s293
      %s310 = sphi 0, %s294
    $region4: #{rambutan_slice.1} parent=1 // loop_header_branch
      %26 = sbr.rel (%p24) target = $region8
    $region5: #{rambutan_slice.1} parent=1 // loop_body
      %s28 = ssub.s32 %s23, 1
      %s29 = ssub.s32 %s23, 2
      %s30 = sadd.s32 %s23, 1
      %s31 = ssub.s32 %s23, %s30
      %p32 = scmp.eq.s32.totalorder %s31, 0
      %s34 = sadd.s32 %s33, 1
      %s35 = scalar_select %p32, %s33, %s34
      %p38 = pneg %p32
      %p39 = scmp.eq.s32.totalorder %s23, 1
      %p40 = por %p38, %p39
      %p41 = scmp.ne.s32.totalorder %s33, %s36
      %p42 = scmp.eq.s32.totalorder %s23, 0
      %p43 = por %p41, %p42
      %p44 = scmp.ne.s32.totalorder %s33, %s36
      %p45 = scmp.eq.s32.totalorder %s28, 1
      %p46 = por %p44, %p45
      %p47 = scmp.ne.s32.totalorder %s36, %s37
      %p48 = scmp.eq.s32.totalorder %s28, 0
      %p49 = por %p47, %p48
      %p50 = scmp.ne.s32.totalorder %s36, %s37
      %p51 = scmp.eq.s32.totalorder %s29, 1
      %p52 = por %p50, %p51
      %p54 = scmp.ne.s32.totalorder %s37, %s53
      %p55 = scmp.eq.s32.totalorder %s29, 0
      %p56 = por %p54, %p55
      %s58 = sadd.s32 %s57, 1
      %p61 = scmp.eq.s32.totalorder %s23, 1
      %p62 = scmp.ne.s32.totalorder %s57, %s59
      %p63 = scmp.eq.s32.totalorder %s23, 0
      %p64 = por %p62, %p63
      %p65 = scmp.ne.s32.totalorder %s57, %s59
      %p66 = scmp.eq.s32.totalorder %s28, 1
      %p67 = por %p65, %p66
      %p68 = scmp.ne.s32.totalorder %s59, %s60
      %p69 = scmp.eq.s32.totalorder %s28, 0
      %p70 = por %p68, %p69
      %p71 = scmp.ne.s32.totalorder %s59, %s60
      %p72 = scmp.eq.s32.totalorder %s29, 1
      %p73 = por %p71, %p72
      %p75 = scmp.ne.s32.totalorder %s60, %s74
      %p76 = scmp.eq.s32.totalorder %s29, 0
      %p77 = por %p75, %p76
      %s79 = sadd.s32 %s78, 1
      %p82 = scmp.eq.s32.totalorder %s23, 1
      %p83 = scmp.ne.s32.totalorder %s78, %s80
      %p84 = scmp.eq.s32.totalorder %s23, 0
      %p85 = por %p83, %p84
      %p86 = scmp.ne.s32.totalorder %s78, %s80
      %p87 = scmp.eq.s32.totalorder %s28, 1
      %p88 = por %p86, %p87
      %p89 = scmp.ne.s32.totalorder %s80, %s81
      %p90 = scmp.eq.s32.totalorder %s28, 0
      %p91 = por %p89, %p90
      %p92 = scmp.ne.s32.totalorder %s80, %s81
      %p93 = scmp.eq.s32.totalorder %s29, 1
      %p94 = por %p92, %p93
      %p96 = scmp.ne.s32.totalorder %s81, %s95
      %p97 = scmp.eq.s32.totalorder %s29, 0
      %p98 = por %p96, %p97
      %s100 = sadd.s32 %s99, 1
      %p103 = scmp.eq.s32.totalorder %s23, 1
      %p104 = scmp.ne.s32.totalorder %s99, %s101
      %p105 = scmp.eq.s32.totalorder %s23, 0
      %p106 = por %p104, %p105
      %p107 = scmp.ne.s32.totalorder %s99, %s101
      %p108 = scmp.eq.s32.totalorder %s28, 1
      %p109 = por %p107, %p108
      %p110 = scmp.ne.s32.totalorder %s101, %s102
      %p111 = scmp.eq.s32.totalorder %s28, 0
      %p112 = por %p110, %p111
      %p113 = scmp.ne.s32.totalorder %s101, %s102
      %p114 = scmp.eq.s32.totalorder %s29, 1
      %p115 = por %p113, %p114
      %p117 = scmp.ne.s32.totalorder %s102, %s116
      %p118 = scmp.eq.s32.totalorder %s29, 0
      %p119 = por %p117, %p118
      %s121 = sadd.s32 %s120, 1
      %p124 = scmp.eq.s32.totalorder %s23, 1
      %p125 = scmp.ne.s32.totalorder %s120, %s122
      %p126 = scmp.eq.s32.totalorder %s23, 0
      %p127 = por %p125, %p126
      %p128 = scmp.ne.s32.totalorder %s120, %s122
      %p129 = scmp.eq.s32.totalorder %s28, 1
      %p130 = por %p128, %p129
      %p131 = scmp.ne.s32.totalorder %s122, %s123
      %p132 = scmp.eq.s32.totalorder %s28, 0
      %p133 = por %p131, %p132
      %p134 = scmp.ne.s32.totalorder %s122, %s123
      %p135 = scmp.eq.s32.totalorder %s29, 1
      %p136 = por %p134, %p135
      %p138 = scmp.ne.s32.totalorder %s123, %s137
      %p139 = scmp.eq.s32.totalorder %s29, 0
      %p140 = por %p138, %p139
      %s142 = sadd.s32 %s141, 1
      %p145 = scmp.eq.s32.totalorder %s23, 1
      %p146 = scmp.ne.s32.totalorder %s141, %s143
      %p147 = scmp.eq.s32.totalorder %s23, 0
      %p148 = por %p146, %p147
      %p149 = scmp.ne.s32.totalorder %s141, %s143
      %p150 = scmp.eq.s32.totalorder %s28, 1
      %p151 = por %p149, %p150
      %p152 = scmp.ne.s32.totalorder %s143, %s144
      %p153 = scmp.eq.s32.totalorder %s28, 0
      %p154 = por %p152, %p153
      %p155 = scmp.ne.s32.totalorder %s143, %s144
      %p156 = scmp.eq.s32.totalorder %s29, 1
      %p157 = por %p155, %p156
      %p159 = scmp.ne.s32.totalorder %s144, %s158
      %p160 = scmp.eq.s32.totalorder %s29, 0
      %p161 = por %p159, %p160
      %s163 = sadd.s32 %s162, 1
      %p166 = scmp.eq.s32.totalorder %s23, 1
      %p167 = scmp.ne.s32.totalorder %s162, %s164
      %p168 = scmp.eq.s32.totalorder %s23, 0
      %p169 = por %p167, %p168
      %p170 = scmp.ne.s32.totalorder %s162, %s164
      %p171 = scmp.eq.s32.totalorder %s28, 1
      %p172 = por %p170, %p171
      %p173 = scmp.ne.s32.totalorder %s164, %s165
      %p174 = scmp.eq.s32.totalorder %s28, 0
      %p175 = por %p173, %p174
      %p176 = scmp.ne.s32.totalorder %s164, %s165
      %p177 = scmp.eq.s32.totalorder %s29, 1
      %p178 = por %p176, %p177
      %p180 = scmp.ne.s32.totalorder %s165, %s179
      %p181 = scmp.eq.s32.totalorder %s29, 0
      %p182 = por %p180, %p181
      %s184 = sadd.s32 %s183, 1
      %p187 = scmp.eq.s32.totalorder %s23, 1
      %p188 = scmp.ne.s32.totalorder %s183, %s185
      %p189 = scmp.eq.s32.totalorder %s23, 0
      %p190 = por %p188, %p189
      %p191 = scmp.ne.s32.totalorder %s183, %s185
      %p192 = scmp.eq.s32.totalorder %s28, 1
      %p193 = por %p191, %p192
      %p194 = scmp.ne.s32.totalorder %s185, %s186
      %p195 = scmp.eq.s32.totalorder %s28, 0
      %p196 = por %p194, %p195
      %p197 = scmp.ne.s32.totalorder %s185, %s186
      %p198 = scmp.eq.s32.totalorder %s29, 1
      %p199 = por %p197, %p198
      %p201 = scmp.ne.s32.totalorder %s186, %s200
      %p202 = scmp.eq.s32.totalorder %s29, 0
      %p203 = por %p201, %p202
      %s205 = sadd.s32 %s204, 1
      %p208 = scmp.eq.s32.totalorder %s23, 1
      %p209 = scmp.ne.s32.totalorder %s204, %s206
      %p210 = scmp.eq.s32.totalorder %s23, 0
      %p211 = por %p209, %p210
      %p212 = scmp.ne.s32.totalorder %s204, %s206
      %p213 = scmp.eq.s32.totalorder %s28, 1
      %p214 = por %p212, %p213
      %p215 = scmp.ne.s32.totalorder %s206, %s207
      %p216 = scmp.eq.s32.totalorder %s28, 0
      %p217 = por %p215, %p216
      %p218 = scmp.ne.s32.totalorder %s206, %s207
      %p219 = scmp.eq.s32.totalorder %s29, 1
      %p220 = por %p218, %p219
      %p222 = scmp.ne.s32.totalorder %s207, %s221
      %p223 = scmp.eq.s32.totalorder %s29, 0
      %p224 = por %p222, %p223
      %s226 = sadd.s32 %s225, 1
      %p229 = scmp.eq.s32.totalorder %s23, 1
      %p230 = scmp.ne.s32.totalorder %s225, %s227
      %p231 = scmp.eq.s32.totalorder %s23, 0
      %p232 = por %p230, %p231
      %p233 = scmp.ne.s32.totalorder %s225, %s227
      %p234 = scmp.eq.s32.totalorder %s28, 1
      %p235 = por %p233, %p234
      %p236 = scmp.ne.s32.totalorder %s227, %s228
      %p237 = scmp.eq.s32.totalorder %s28, 0
      %p238 = por %p236, %p237
      %p239 = scmp.ne.s32.totalorder %s227, %s228
      %p240 = scmp.eq.s32.totalorder %s29, 1
      %p241 = por %p239, %p240
      %p243 = scmp.ne.s32.totalorder %s228, %s242
      %p244 = scmp.eq.s32.totalorder %s29, 0
      %p245 = por %p243, %p244
      %s247 = sadd.s32 %s246, 1
      %p250 = scmp.eq.s32.totalorder %s23, 1
      %p251 = scmp.ne.s32.totalorder %s246, %s248
      %p252 = scmp.eq.s32.totalorder %s23, 0
      %p253 = por %p251, %p252
      %p254 = scmp.ne.s32.totalorder %s246, %s248
      %p255 = scmp.eq.s32.totalorder %s28, 1
      %p256 = por %p254, %p255
      %p257 = scmp.ne.s32.totalorder %s248, %s249
      %p258 = scmp.eq.s32.totalorder %s28, 0
      %p259 = por %p257, %p258
      %p260 = scmp.ne.s32.totalorder %s248, %s249
      %p261 = scmp.eq.s32.totalorder %s29, 1
      %p262 = por %p260, %p261
      %p264 = scmp.ne.s32.totalorder %s249, %s263
      %p265 = scmp.eq.s32.totalorder %s29, 0
      %p266 = por %p264, %p265
      %s268 = sadd.s32 %s267, 1
      %p271 = scmp.eq.s32.totalorder %s23, 1
      %p272 = scmp.ne.s32.totalorder %s267, %s269
      %p273 = scmp.eq.s32.totalorder %s23, 0
      %p274 = por %p272, %p273
      %p275 = scmp.ne.s32.totalorder %s267, %s269
      %p276 = scmp.eq.s32.totalorder %s28, 1
      %p277 = por %p275, %p276
      %p278 = scmp.ne.s32.totalorder %s269, %s270
      %p279 = scmp.eq.s32.totalorder %s28, 0
      %p280 = por %p278, %p279
      %p281 = scmp.ne.s32.totalorder %s269, %s270
      %p282 = scmp.eq.s32.totalorder %s29, 1
      %p283 = por %p281, %p282
      %p285 = scmp.ne.s32.totalorder %s270, %s284
      %p286 = scmp.eq.s32.totalorder %s29, 0
      %p287 = por %p285, %p286
      %s288 = ssub.s32 %s23, %s30
      %p289 = scmp.eq.s32.totalorder %s288, 0
      %s291 = sadd.s32 %s290, 1
      %s292 = scalar_select %p289, %s290, %s291
      %p295 = pneg %p289
      %p296 = scmp.eq.s32.totalorder %s23, 1
      %p297 = por %p295, %p296
      %p298 = scmp.ne.s32.totalorder %s290, %s293
      %p299 = scmp.eq.s32.totalorder %s23, 0
      %p300 = por %p298, %p299
      %p301 = scmp.ne.s32.totalorder %s290, %s293
      %p302 = scmp.eq.s32.totalorder %s28, 1
      %p303 = por %p301, %p302
      %p304 = scmp.ne.s32.totalorder %s293, %s294
      %p305 = scmp.eq.s32.totalorder %s28, 0
      %p306 = por %p304, %p305
      %p307 = scmp.ne.s32.totalorder %s293, %s294
      %p308 = scmp.eq.s32.totalorder %s29, 1
      %p309 = por %p307, %p308
      %p311 = scmp.ne.s32.totalorder %s294, %s310
      %p312 = scmp.eq.s32.totalorder %s29, 0
      %p313 = por %p311, %p312
      %p314 = scmp.le.s32.totalorder 1, %s23
      %p315 = scmp.lt.s32.totalorder %s23, 3
      %p316 = pnand %p314, %p315
      %p317 = pneg %p316
      // Predicated region
      $region9: #{rambutan_slice.1} parent=5 // pred_check
        _
      $region10: #{rambutan_slice.1} parent=5 // pred_check_branch
        %319 = sbr.rel (%p316) target = $region12
      $region11: #{rambutan_slice.1} parent=5 // pred_region
        %s320 = ssub.s32 %s23, 1
        // Predicated region
        $region13: #{rambutan_slice.1} parent=11 // pred_check
          %p321 = pneg %p70
        $region14: #{rambutan_slice.1} parent=11 // pred_check_branch
          %323 = sbr.rel (%p321) target = $region16
        $region15: #{rambutan_slice.1} parent=11 // pred_region
          _
        $region16: #{rambutan_slice.1} parent=11 // pred_fallthru
          _
        // Predicated region
        $region17: #{rambutan_slice.1} parent=11 // pred_check
          %p324 = pneg %p91
        $region18: #{rambutan_slice.1} parent=11 // pred_check_branch
          %326 = sbr.rel (%p324) target = $region20
        $region19: #{rambutan_slice.1} parent=11 // pred_region
          _
        $region20: #{rambutan_slice.1} parent=11 // pred_fallthru
          _
        // Predicated region
        $region21: #{rambutan_slice.1} parent=11 // pred_check
          %p327 = pneg %p112
        $region22: #{rambutan_slice.1} parent=11 // pred_check_branch
          %329 = sbr.rel (%p327) target = $region24
        $region23: #{rambutan_slice.1} parent=11 // pred_region
          _
        $region24: #{rambutan_slice.1} parent=11 // pred_fallthru
          _
        // Predicated region
        $region25: #{rambutan_slice.1} parent=11 // pred_check
          %p330 = pneg %p133
        $region26: #{rambutan_slice.1} parent=11 // pred_check_branch
          %332 = sbr.rel (%p330) target = $region28
        $region27: #{rambutan_slice.1} parent=11 // pred_region
          _
        $region28: #{rambutan_slice.1} parent=11 // pred_fallthru
          _
        // Predicated region
        $region29: #{rambutan_slice.1} parent=11 // pred_check
          %p333 = pneg %p154
        $region30: #{rambutan_slice.1} parent=11 // pred_check_branch
          %335 = sbr.rel (%p333) target = $region32
        $region31: #{rambutan_slice.1} parent=11 // pred_region
          _
        $region32: #{rambutan_slice.1} parent=11 // pred_fallthru
          _
        // Predicated region
        $region33: #{rambutan_slice.1} parent=11 // pred_check
          %p336 = pneg %p175
        $region34: #{rambutan_slice.1} parent=11 // pred_check_branch
          %338 = sbr.rel (%p336) target = $region36
        $region35: #{rambutan_slice.1} parent=11 // pred_region
          _
        $region36: #{rambutan_slice.1} parent=11 // pred_fallthru
          _
        // Predicated region
        $region37: #{rambutan_slice.1} parent=11 // pred_check
          %p339 = pneg %p196
        $region38: #{rambutan_slice.1} parent=11 // pred_check_branch
          %341 = sbr.rel (%p339) target = $region40
        $region39: #{rambutan_slice.1} parent=11 // pred_region
          _
        $region40: #{rambutan_slice.1} parent=11 // pred_fallthru
          _
        // Predicated region
        $region41: #{rambutan_slice.1} parent=11 // pred_check
          %p342 = pneg %p217
        $region42: #{rambutan_slice.1} parent=11 // pred_check_branch
          %344 = sbr.rel (%p342) target = $region44
        $region43: #{rambutan_slice.1} parent=11 // pred_region
          _
        $region44: #{rambutan_slice.1} parent=11 // pred_fallthru
          _
        // Predicated region
        $region45: #{rambutan_slice.1} parent=11 // pred_check
          %p345 = pneg %p238
        $region46: #{rambutan_slice.1} parent=11 // pred_check_branch
          %347 = sbr.rel (%p345) target = $region48
        $region47: #{rambutan_slice.1} parent=11 // pred_region
          _
        $region48: #{rambutan_slice.1} parent=11 // pred_fallthru
          _
        // Predicated region
        $region49: #{rambutan_slice.1} parent=11 // pred_check
          %p348 = pneg %p259
        $region50: #{rambutan_slice.1} parent=11 // pred_check_branch
          %350 = sbr.rel (%p348) target = $region52
        $region51: #{rambutan_slice.1} parent=11 // pred_region
          %s352 = ssub.s32 16, 16
          %353 = vsyncadd [#allocation5], %s352
          %s355 = sshll.u32 %s10, 4
          %s356 = int_to_ptr.vmem [resolvable:$true] %s355
          %358 = dma.vmem_to_smem %s356, 16, [#allocation3], [#allocation5]
        $region52: #{rambutan_slice.1} parent=11 // pred_fallthru
          _
        // Predicated region
        $region53: #{rambutan_slice.1} parent=11 // pred_check
          %p359 = pneg %p280
        $region54: #{rambutan_slice.1} parent=11 // pred_check_branch
          %361 = sbr.rel (%p359) target = $region56
        $region55: #{rambutan_slice.1} parent=11 // pred_region
          _
        $region56: #{rambutan_slice.1} parent=11 // pred_fallthru
          _
      $region12: #{rambutan_slice.1} parent=5 // pred_fallthru
        _
      %p362 = scmp.lt.s32.totalorder %s23, 2
      // Predicated region
      $region57: #{rambutan_slice.1} parent=5 // pred_check
        %p363 = pneg %p362
      $region58: #{rambutan_slice.1} parent=5 // pred_check_branch
        %365 = sbr.rel (%p363) target = $region60
      $region59: #{rambutan_slice.1} parent=5 // pred_region
        // Predicated region
        $region61: #{rambutan_slice.1} parent=59 // pred_check
          %p366 = pneg %p43
        $region62: #{rambutan_slice.1} parent=59 // pred_check_branch
          %368 = sbr.rel (%p366) target = $region64
        $region63: #{rambutan_slice.1} parent=59 // pred_region
          %p369 = scmp.lt.s32.totalorder %s23, 1
          %s370 = scalar_select %p369, %s23, 1
          %s371 = smul.addr %s370, 2
          %s372 = smul.addr %s371, 8
          %s373 = scalar_lea.vmem %s0, %s372
        $region64: #{rambutan_slice.1} parent=59 // pred_fallthru
          _
      $region60: #{rambutan_slice.1} parent=5 // pred_fallthru
        _
      %p374 = scmp.le.s32.totalorder 1, %s23
      %p375 = scmp.lt.s32.totalorder %s23, 3
      %p376 = pnand %p374, %p375
      %p377 = pneg %p376
      // Predicated region
      $region65: #{rambutan_slice.1} parent=5 // pred_check
        _
      $region66: #{rambutan_slice.1} parent=5 // pred_check_branch
        %379 = sbr.rel (%p376) target = $region68
      $region67: #{rambutan_slice.1} parent=5 // pred_region
        %s380 = ssub.s32 %s23, 1
        // Predicated region
        $region69: #{rambutan_slice.1} parent=67 // pred_check
          %p381 = pneg %p259
        $region70: #{rambutan_slice.1} parent=67 // pred_check_branch
          %383 = sbr.rel (%p381) target = $region72
        $region71: #{rambutan_slice.1} parent=67 // pred_region
          %384 = dma.done [#allocation5], 16
        $region72: #{rambutan_slice.1} parent=67 // pred_fallthru
          _
        %385 = sfence
        %p386 = scmp.lt.s32.totalorder %s28, 1
        %s387 = scalar_select %p386, %s28, 1
        %s388 = smul.addr %s387, 2
        %s389 = smul.addr %s388, 8
        %s390 = scalar_lea.vmem %s0, %s389
        %p391 = pneg %p49
        %p392 = pneg %p46
        %p393 = pneg %p70
        %p394 = pneg %p67
        %p395 = pneg %p91
        %p396 = pneg %p88
        %p397 = pneg %p112
        %p398 = pneg %p109
        %p399 = pneg %p133
        %p400 = pneg %p130
        %p401 = pneg %p154
        %p402 = pneg %p151
        %p403 = pneg %p175
        %p404 = pneg %p172
        %p405 = pneg %p196
        %p406 = pneg %p193
        %p407 = pneg %p217
        %p408 = pneg %p214
        %p409 = pneg %p238
        %p410 = pneg %p235
        %p411 = pneg %p259
        %p412 = pneg %p256
        %p413 = pneg %p280
        %p414 = pneg %p277
        %p415 = pneg %p306
        %p416 = pneg %p303
        %s417 = sand.u32 %s293, 1
        %s418 = scalar_lea.sflag [#allocation4], %s417
        %s419 = sand.u32 %s293, 1
        %s420 = smul.addr %s419, 16
        %s421 = scalar_lea.vmem [#allocation6], %s420
        %p422 = scmp.lt.s32.totalorder %s28, 1
        %s423 = scalar_select %p422, %s28, 1
        %s424 = smul.addr %s423, 2
        %s425 = smul.addr %s424, 8
        %s426 = scalar_lea.vmem %s0, %s425
        %v427 = vld [vmem:[%s426] sm:$0xff]
        %v428 = vld [vmem:[%s426 + $0x8] sm:$0xff]
        %429 = vadd.xlane.f32.xlu0 %v427
        %v430 = vpop.xlane.xlu0 %429
        %431 = vadd.xlane.f32.xlu0 %v428
        %v432 = vpop.xlane.xlu0 %431
        %v433 = vrcp.pop 128.0
        %v434 = vmul.f32 %v430, %v433
        %v435 = vmul.f32 %v432, %v433
        %v436 = vsub.f32 %v427, %v434
        %v437 = vsub.f32 %v428, %v435
        %v438 = vmul.f32 %v436, %v436
        %v439 = vmul.f32 %v437, %v437
        %440 = vadd.xlane.f32.xlu0 %v438
        %v441 = vpop.xlane.xlu0 %440
        %442 = vadd.xlane.f32.xlu0 %v439
        %v443 = vpop.xlane.xlu0 %442
        %v444 = vmul.f32 %v441, %v433
        %v445 = vmul.f32 %v443, %v433
        %v446 = vadd.f32 %v444, 1e-05
        %v447 = vadd.f32 %v445, 1e-05
        %v448 = vrsqrt.pop %v446
        %v449 = vrsqrt.pop %v447
        %v450 = vmul.f32 %v436, %v448
        %v451 = vmul.f32 %v437, %v449
        %v452 = vld [vmem:[%s1] sm:$0x1]
        %v454 = vlaneseq
        %v455 = vshrl.u32 %v454, 7
        %v456 = vsub.s32 0, %v455
        %v457 = vrot.slane %v452, %v456
        %v459 = vmul.f32 %v450, %v457
        %v460 = vmul.f32 %v451, %v457
        %v461 = vld [vmem:[%s2] sm:$0x1]
        %v463 = vlaneseq
        %v464 = vshrl.u32 %v463, 7
        %v465 = vsub.s32 0, %v464
        %v466 = vrot.slane %v461, %v465
        %v468 = vadd.f32 %v459, %v466
        %v469 = vadd.f32 %v460, %v466
        %v470 = vld [vmem:[%s3] sm:$0xff]
        %v471 = vld [vmem:[%s3 + $0x8] sm:$0xff]
        %v472 = vld [vmem:[%s3 + $0x10] sm:$0xff]
        %v473 = vld [vmem:[%s3 + $0x18] sm:$0xff]
        %v474 = vld [vmem:[%s3 + $0x20] sm:$0xff]
        %v475 = vld [vmem:[%s3 + $0x28] sm:$0xff]
        %v476 = vld [vmem:[%s3 + $0x30] sm:$0xff]
        %v477 = vld [vmem:[%s3 + $0x38] sm:$0xff]
        %v478 = vld [vmem:[%s3 + $0x40] sm:$0xff]
        %v479 = vld [vmem:[%s3 + $0x48] sm:$0xff]
        %v480 = vld [vmem:[%s3 + $0x50] sm:$0xff]
        %v481 = vld [vmem:[%s3 + $0x58] sm:$0xff]
        %v482 = vld [vmem:[%s3 + $0x60] sm:$0xff]
        %v483 = vld [vmem:[%s3 + $0x68] sm:$0xff]
        %v484 = vld [vmem:[%s3 + $0x70] sm:$0xff]
        %v485 = vld [vmem:[%s3 + $0x78] sm:$0xff]
        %v486 = vld [vmem:[%s3 + $0x80] sm:$0xff]
        %v487 = vld [vmem:[%s3 + $0x88] sm:$0xff]
        %v488 = vld [vmem:[%s3 + $0x90] sm:$0xff]
        %v489 = vld [vmem:[%s3 + $0x98] sm:$0xff]
        %v490 = vld [vmem:[%s3 + $0xa0] sm:$0xff]
        %v491 = vld [vmem:[%s3 + $0xa8] sm:$0xff]
        %v492 = vld [vmem:[%s3 + $0xb0] sm:$0xff]
        %v493 = vld [vmem:[%s3 + $0xb8] sm:$0xff]
        %v494 = vld [vmem:[%s3 + $0xc0] sm:$0xff]
        %v495 = vld [vmem:[%s3 + $0xc8] sm:$0xff]
        %v496 = vld [vmem:[%s3 + $0xd0] sm:$0xff]
        %v497 = vld [vmem:[%s3 + $0xd8] sm:$0xff]
        %v498 = vld [vmem:[%s3 + $0xe0] sm:$0xff]
        %v499 = vld [vmem:[%s3 + $0xe8] sm:$0xff]
        %v500 = vld [vmem:[%s3 + $0xf0] sm:$0xff]
        %v501 = vld [vmem:[%s3 + $0xf8] sm:$0xff]
        %v502 = vld [vmem:[%s3 + $0x100] sm:$0xff]
        %v503 = vld [vmem:[%s3 + $0x108] sm:$0xff]
        %v504 = vld [vmem:[%s3 + $0x110] sm:$0xff]
        %v505 = vld [vmem:[%s3 + $0x118] sm:$0xff]
        %v506 = vld [vmem:[%s3 + $0x120] sm:$0xff]
        %v507 = vld [vmem:[%s3 + $0x128] sm:$0xff]
        %v508 = vld [vmem:[%s3 + $0x130] sm:$0xff]
        %v509 = vld [vmem:[%s3 + $0x138] sm:$0xff]
        %v510 = vld [vmem:[%s3 + $0x140] sm:$0xff]
        %v511 = vld [vmem:[%s3 + $0x148] sm:$0xff]
        %v512 = vld [vmem:[%s3 + $0x150] sm:$0xff]
        %v513 = vld [vmem:[%s3 + $0x158] sm:$0xff]
        %v514 = vld [vmem:[%s3 + $0x160] sm:$0xff]
        %v515 = vld [vmem:[%s3 + $0x168] sm:$0xff]
        %v516 = vld [vmem:[%s3 + $0x170] sm:$0xff]
        %v517 = vld [vmem:[%s3 + $0x178] sm:$0xff]
        %518 = vmatprep.subr.mxu0 %v516
        %519 = vmatpush1.msra.mxu0 %v515
        %520 = vmatprep.subr.mxu0 %v513
        %521 = vmatpush1.msra.mxu0 %v512
        %522 = vmatprep.subr.mxu0 %v510
        %523 = vmatpush1.msra.mxu0 %v509
        %524 = vmatprep.subr.mxu0 %v507
        %525 = vmatpush1.msra.mxu0 %v506
        %526 = vmatprep.subr.mxu0 %v504
        %527 = vmatpush1.msra.mxu0 %v503
        %528 = vmatprep.subr.mxu0 %v501
        %529 = vmatpush1.msra.mxu0 %v500
        %530 = vmatprep.subr.mxu0 %v498
        %531 = vmatpush1.msra.mxu0 %v497
        %532 = vmatprep.subr.mxu0 %v495
        %533 = vmatpush1.msra.mxu0 %v494
        %534 = vmatprep.subr.mxu0 %v492
        %535 = vmatpush1.msra.mxu0 %v491
        %536 = vmatprep.subr.mxu0 %v489
        %537 = vmatpush1.msra.mxu0 %v488
        %538 = vmatprep.subr.mxu0 %v486
        %539 = vmatpush1.msra.mxu0 %v485
        %540 = vmatprep.subr.mxu0 %v483
        %541 = vmatpush1.msra.mxu0 %v482
        %542 = vmatprep.subr.mxu0 %v480
        %543 = vmatpush1.msra.mxu0 %v479
        %544 = vmatprep.subr.mxu0 %v477
        %545 = vmatpush1.msra.mxu0 %v476
        %546 = vmatprep.subr.mxu0 %v474
        %547 = vmatpush1.msra.mxu0 %v473
        %548 = vmatprep.subr.mxu0 %v471
        %549 = vmatpush1.msra.mxu0 %v470
        %550 = vmatprep.subr.mxu0 0.0
        %551 = vmatpush2.msra.mxu0 0.0
        %552 = vmatprep.subr.mxu0 0.0
        %553 = vmatpush2.msra.mxu0 0.0
        %554 = vmatprep.subr.mxu0 0.0
        %555 = vmatpush2.msra.mxu0 0.0
        %556 = vmatprep.subr.mxu0 0.0
        %557 = vmatpush2.msra.mxu0 0.0
        %558 = vmatprep.subr.mxu0 0.0
        %559 = vmatpush2.msra.mxu0 0.0
        %560 = vmatprep.subr.mxu0 0.0
        %561 = vmatpush2.msra.mxu0 0.0
        %562 = vmatprep.subr.mxu0 0.0
        %563 = vmatpush2.msra.mxu0 0.0
        %564 = vmatprep.subr.mxu0 0.0
        %565 = vmatpush2.msra.mxu0 0.0
        %566 = vmatprep.subr.mxu0 0.0
        %567 = vmatpush2.msra.mxu0 0.0
        %568 = vmatprep.subr.mxu0 0.0
        %569 = vmatpush2.msra.mxu0 0.0
        %570 = vmatprep.subr.mxu0 0.0
        %571 = vmatpush2.msra.mxu0 0.0
        %572 = vmatprep.subr.mxu0 0.0
        %573 = vmatpush2.msra.mxu0 0.0
        %574 = vmatprep.subr.mxu0 0.0
        %575 = vmatpush2.msra.mxu0 0.0
        %576 = vmatprep.subr.mxu0 0.0
        %577 = vmatpush2.msra.mxu0 0.0
        %578 = vmatprep.subr.mxu0 0.0
        %579 = vmatpush2.msra.mxu0 0.0
        %580 = vmatprep.subr.mxu0 0.0
        %581 = vmatpush2.msra.mxu0 0.0
        %582 = vmatprep.mubr.f32.mxu0 0.0
        %583 = vmatmul.mubr.f32.gmra.mxu0 %v468
        %v584 = vpop.f32.mrf.mxu0
        %v585 = vadd.f32 0.0, %v584
        %v586 = vpop.f32.mrf.mxu0
        %v587 = vadd.f32 0.0, %v586
        %588 = vmatprep.mubr.f32.mxu0 0.0
        %589 = vmatmul.mubr.f32.gmra.mxu0 %v469
        %v590 = vpop.f32.mrf.mxu0
        %v591 = vadd.f32 0.0, %v590
        %v592 = vpop.f32.mrf.mxu0
        %v593 = vadd.f32 0.0, %v592
        %594 = vdwg.mxu0
        %595 = vmatprep.subr.mxu0 0.0
        %596 = vmatpush1.msra.mxu0 %v517
        %597 = vmatprep.subr.mxu0 0.0
        %598 = vmatpush1.msra.mxu0 %v514
        %599 = vmatprep.subr.mxu0 0.0
        %600 = vmatpush1.msra.mxu0 %v511
        %601 = vmatprep.subr.mxu0 0.0
        %602 = vmatpush1.msra.mxu0 %v508
        %603 = vmatprep.subr.mxu0 0.0
        %604 = vmatpush1.msra.mxu0 %v505
        %605 = vmatprep.subr.mxu0 0.0
        %606 = vmatpush1.msra.mxu0 %v502
        %607 = vmatprep.subr.mxu0 0.0
        %608 = vmatpush1.msra.mxu0 %v499
        %609 = vmatprep.subr.mxu0 0.0
        %610 = vmatpush1.msra.mxu0 %v496
        %611 = vmatprep.subr.mxu0 0.0
        %612 = vmatpush1.msra.mxu0 %v493
        %613 = vmatprep.subr.mxu0 0.0
        %614 = vmatpush1.msra.mxu0 %v490
        %615 = vmatprep.subr.mxu0 0.0
        %616 = vmatpush1.msra.mxu0 %v487
        %617 = vmatprep.subr.mxu0 0.0
        %618 = vmatpush1.msra.mxu0 %v484
        %619 = vmatprep.subr.mxu0 0.0
        %620 = vmatpush1.msra.mxu0 %v481
        %621 = vmatprep.subr.mxu0 0.0
        %622 = vmatpush1.msra.mxu0 %v478
        %623 = vmatprep.subr.mxu0 0.0
        %624 = vmatpush1.msra.mxu0 %v475
        %625 = vmatprep.subr.mxu0 0.0
        %626 = vmatpush1.msra.mxu0 %v472
        %627 = vmatprep.subr.mxu0 0.0
        %628 = vmatpush2.msra.mxu0 0.0
        %629 = vmatprep.subr.mxu0 0.0
        %630 = vmatpush2.msra.mxu0 0.0
        %631 = vmatprep.subr.mxu0 0.0
        %632 = vmatpush2.msra.mxu0 0.0
        %633 = vmatprep.subr.mxu0 0.0
        %634 = vmatpush2.msra.mxu0 0.0
        %635 = vmatprep.subr.mxu0 0.0
        %636 = vmatpush2.msra.mxu0 0.0
        %637 = vmatprep.subr.mxu0 0.0
        %638 = vmatpush2.msra.mxu0 0.0
        %639 = vmatprep.subr.mxu0 0.0
        %640 = vmatpush2.msra.mxu0 0.0
        %641 = vmatprep.subr.mxu0 0.0
        %642 = vmatpush2.msra.mxu0 0.0
        %643 = vmatprep.subr.mxu0 0.0
        %644 = vmatpush2.msra.mxu0 0.0
        %645 = vmatprep.subr.mxu0 0.0
        %646 = vmatpush2.msra.mxu0 0.0
        %647 = vmatprep.subr.mxu0 0.0
        %648 = vmatpush2.msra.mxu0 0.0
        %649 = vmatprep.subr.mxu0 0.0
        %650 = vmatpush2.msra.mxu0 0.0
        %651 = vmatprep.subr.mxu0 0.0
        %652 = vmatpush2.msra.mxu0 0.0
        %653 = vmatprep.subr.mxu0 0.0
        %654 = vmatpush2.msra.mxu0 0.0
        %655 = vmatprep.subr.mxu0 0.0
        %656 = vmatpush2.msra.mxu0 0.0
        %657 = vmatprep.subr.mxu0 0.0
        %658 = vmatpush2.msra.mxu0 0.0
        %659 = vmatprep.mubr.f32.mxu0 0.0
        %660 = vmatmul.mubr.f32.gmra.mxu0 %v468
        %v661 = vpop.f32.mrf.mxu0
        %v662 = vadd.f32 0.0, %v661
        %v663 = vpop.f32.mrf.mxu0
        %664 = vmatprep.mubr.f32.mxu0 0.0
        %665 = vmatmul.mubr.f32.gmra.mxu0 %v469
        %v666 = vpop.f32.mrf.mxu0
        %v667 = vadd.f32 0.0, %v666
        %v668 = vpop.f32.mrf.mxu0
        %669 = vdwg.mxu0
        %672 = vrot.lane.b32.xlu0 %v585, 96
        %v673 = vpop.permute.xlu0 %672
        %674 = vrot.lane.b32.xlu0 %v591, 96
        %v675 = vpop.permute.xlu0 %674
        %676 = vrot.lane.b32.xlu0 %v585, 64
        %v677 = vpop.permute.xlu0 %676
        %678 = vrot.lane.b32.xlu0 %v591, 64
        %v679 = vpop.permute.xlu0 %678
        %680 = vrot.lane.b32.xlu0 %v585, 32
        %v681 = vpop.permute.xlu0 %680
        %682 = vrot.lane.b32.xlu0 %v591, 32
        %v683 = vpop.permute.xlu0 %682
        %686 = vrot.lane.b32.xlu0 %v587, 96
        %v687 = vpop.permute.xlu0 %686
        %688 = vrot.lane.b32.xlu0 %v593, 96
        %v689 = vpop.permute.xlu0 %688
        %690 = vrot.lane.b32.xlu0 %v587, 64
        %v691 = vpop.permute.xlu0 %690
        %692 = vrot.lane.b32.xlu0 %v593, 64
        %v693 = vpop.permute.xlu0 %692
        %694 = vrot.lane.b32.xlu0 %v587, 32
        %v695 = vpop.permute.xlu0 %694
        %696 = vrot.lane.b32.xlu0 %v593, 32
        %v697 = vpop.permute.xlu0 %696
        %700 = vrot.lane.b32.xlu0 %v662, 96
        %v701 = vpop.permute.xlu0 %700
        %702 = vrot.lane.b32.xlu0 %v667, 96
        %v703 = vpop.permute.xlu0 %702
        %706 = vrot.lane.b32.xlu0 %v662, 64
        %v707 = vpop.permute.xlu0 %706
        %708 = vrot.lane.b32.xlu0 %v667, 64
        %v709 = vpop.permute.xlu0 %708
        %712 = vrot.lane.b32.xlu0 %v662, 32
        %v713 = vpop.permute.xlu0 %712
        %714 = vrot.lane.b32.xlu0 %v667, 32
        %v715 = vpop.permute.xlu0 %714
        %vm718 = vcmask 261120
        %v719 = vsel %vm718, %v585, 0
        %v721 = vsel %vm718, %v591, 0
        %v723 = vsel %vm718, %v673, 0
        %v725 = vsel %vm718, %v675, 0
        %v727 = vsel %vm718, %v677, 0
        %v729 = vsel %vm718, %v679, 0
        %v731 = vsel %vm718, %v681, 0
        %v733 = vsel %vm718, %v683, 0
        %v735 = vsel %vm718, %v587, 0
        %v737 = vsel %vm718, %v593, 0
        %v739 = vsel %vm718, %v687, 0
        %v741 = vsel %vm718, %v689, 0
        %v743 = vsel %vm718, %v691, 0
        %v745 = vsel %vm718, %v693, 0
        %v747 = vsel %vm718, %v695, 0
        %v749 = vsel %vm718, %v697, 0
        %751 = vmatprep.subr.mxu0 0.0
        %752 = vmatpush1.xpose.msra.mxu0 0.0
        %753 = vmatprep.subr.mxu0 0.0
        %754 = vmatpush1.xpose.msra.mxu0 0.0
        %755 = vmatprep.subr.mxu0 0.0
        %756 = vmatpush1.xpose.msra.mxu0 0.0
        %757 = vmatprep.subr.mxu0 0.0
        %758 = vmatpush1.xpose.msra.mxu0 0.0
        %759 = vmatprep.subr.mxu0 0.0
        %760 = vmatpush1.xpose.msra.mxu0 0.0
        %761 = vmatprep.subr.mxu0 0.0
        %762 = vmatpush1.xpose.msra.mxu0 0.0
        %763 = vmatprep.subr.mxu0 0.0
        %764 = vmatpush1.xpose.msra.mxu0 0.0
        %765 = vmatprep.subr.mxu0 0.0
        %766 = vmatpush1.xpose.msra.mxu0 0.0
        %767 = vmatprep.subr.mxu0 0.0
        %768 = vmatpush1.xpose.msra.mxu0 %v749
        %769 = vmatprep.subr.mxu0 0.0
        %770 = vmatpush1.xpose.msra.mxu0 %v747
        %771 = vmatprep.subr.mxu0 0.0
        %772 = vmatpush1.xpose.msra.mxu0 %v745
        %773 = vmatprep.subr.mxu0 0.0
        %774 = vmatpush1.xpose.msra.mxu0 %v743
        %775 = vmatprep.subr.mxu0 0.0
        %776 = vmatpush1.xpose.msra.mxu0 %v741
        %777 = vmatprep.subr.mxu0 0.0
        %778 = vmatpush1.xpose.msra.mxu0 %v739
        %779 = vmatprep.subr.mxu0 0.0
        %780 = vmatpush1.xpose.msra.mxu0 %v737
        %781 = vmatprep.subr.mxu0 0.0
        %782 = vmatpush1.xpose.msra.mxu0 %v735
        %783 = vmatprep.subr.mxu0 0.0
        %784 = vmatpush2.xpose.msra.mxu0 0.0
        %785 = vmatprep.subr.mxu0 0.0
        %786 = vmatpush2.xpose.msra.mxu0 0.0
        %787 = vmatprep.subr.mxu0 0.0
        %788 = vmatpush2.xpose.msra.mxu0 0.0
        %789 = vmatprep.subr.mxu0 0.0
        %790 = vmatpush2.xpose.msra.mxu0 0.0
        %791 = vmatprep.subr.mxu0 0.0
        %792 = vmatpush2.xpose.msra.mxu0 0.0
        %793 = vmatprep.subr.mxu0 0.0
        %794 = vmatpush2.xpose.msra.mxu0 0.0
        %795 = vmatprep.subr.mxu0 0.0
        %796 = vmatpush2.xpose.msra.mxu0 0.0
        %797 = vmatprep.subr.mxu0 0.0
        %798 = vmatpush2.xpose.msra.mxu0 0.0
        %799 = vmatprep.subr.mxu0 0.0
        %800 = vmatpush2.xpose.msra.mxu0 0.0
        %801 = vmatprep.subr.mxu0 0.0
        %802 = vmatpush2.xpose.msra.mxu0 0.0
        %803 = vmatprep.subr.mxu0 0.0
        %804 = vmatpush2.xpose.msra.mxu0 0.0
        %805 = vmatprep.subr.mxu0 0.0
        %806 = vmatpush2.xpose.msra.mxu0 0.0
        %807 = vmatprep.subr.mxu0 0.0
        %808 = vmatpush2.xpose.msra.mxu0 0.0
        %809 = vmatprep.subr.mxu0 0.0
        %810 = vmatpush2.xpose.msra.mxu0 0.0
        %811 = vmatprep.subr.mxu0 0.0
        %812 = vmatpush2.xpose.msra.mxu0 0.0
        %813 = vmatprep.subr.mxu0 0.0
        %814 = vmatpush2.xpose.msra.mxu0 0.0
        %815 = vmatprep.mubr.f32.mxu0 0.0
        %816 = vmatmul.mubr.f32.gmra.mxu0 %v719
        %v817 = vpop.f32.mrf.mxu0
        %v818 = vadd.f32 0.0, %v817
        %v819 = vpop.f32.mrf.mxu0
        %820 = vmatprep.mubr.f32.mxu0 0.0
        %821 = vmatmul.mubr.f32.gmra.mxu0 %v721
        %v822 = vpop.f32.mrf.mxu0
        %v823 = vadd.f32 0.0, %v822
        %v824 = vpop.f32.mrf.mxu0
        %825 = vmatprep.mubr.f32.mxu0 0.0
        %826 = vmatmul.mubr.f32.gmra.mxu0 %v723
        %v827 = vpop.f32.mrf.mxu0
        %v828 = vadd.f32 0.0, %v827
        %v829 = vpop.f32.mrf.mxu0
        %830 = vmatprep.mubr.f32.mxu0 0.0
        %831 = vmatmul.mubr.f32.gmra.mxu0 %v725
        %v832 = vpop.f32.mrf.mxu0
        %v833 = vadd.f32 0.0, %v832
        %v834 = vpop.f32.mrf.mxu0
        %835 = vmatprep.mubr.f32.mxu0 0.0
        %836 = vmatmul.mubr.f32.gmra.mxu0 %v727
        %v837 = vpop.f32.mrf.mxu0
        %v838 = vadd.f32 0.0, %v837
        %v839 = vpop.f32.mrf.mxu0
        %840 = vmatprep.mubr.f32.mxu0 0.0
        %841 = vmatmul.mubr.f32.gmra.mxu0 %v729
        %v842 = vpop.f32.mrf.mxu0
        %v843 = vadd.f32 0.0, %v842
        %v844 = vpop.f32.mrf.mxu0
        %845 = vmatprep.mubr.f32.mxu0 0.0
        %846 = vmatmul.mubr.f32.gmra.mxu0 %v731
        %v847 = vpop.f32.mrf.mxu0
        %v848 = vadd.f32 0.0, %v847
        %v849 = vpop.f32.mrf.mxu0
        %850 = vmatprep.mubr.f32.mxu0 0.0
        %851 = vmatmul.mubr.f32.gmra.mxu0 %v733
        %v852 = vpop.f32.mrf.mxu0
        %v853 = vadd.f32 0.0, %v852
        %v854 = vpop.f32.mrf.mxu0
        %855 = vdwg.mxu0
        %v856 = vlaneseq
        %v857 = vshrl.u32 %v856, 7
        %v858 = vadd.s32 %v857, 8
        %v859 = vadd.s32 %v857, 16
        %v860 = vadd.s32 %v857, 24
        %v861 = vadd.s32 %v857, 32
        %v862 = vadd.s32 %v857, 40
        %v863 = vadd.s32 %v857, 48
        %v864 = vadd.s32 %v857, 56
        %v865 = vlaneseq
        %v866 = vand.u32 %v865, 127
        %v867 = vxor.u32 %v857, %v866
        %v868 = vxor.u32 %v858, %v866
        %v869 = vxor.u32 %v859, %v866
        %v870 = vxor.u32 %v860, %v866
        %v871 = vxor.u32 %v861, %v866
        %v872 = vxor.u32 %v862, %v866
        %v873 = vxor.u32 %v863, %v866
        %v874 = vxor.u32 %v864, %v866
        %vm875 = vcmp.lt.s32.totalorder %v867, 16
        %vm876 = vcmp.lt.s32.totalorder %v868, 16
        %vm877 = vcmp.lt.s32.totalorder %v869, 16
        %vm878 = vcmp.lt.s32.totalorder %v870, 16
        %vm879 = vcmp.lt.s32.totalorder %v871, 16
        %vm880 = vcmp.lt.s32.totalorder %v872, 16
        %vm881 = vcmp.lt.s32.totalorder %v873, 16
        %vm882 = vcmp.lt.s32.totalorder %v874, 16
        %v883 = vand.u32 %v866, 15
        %v884 = vand.u32 %v857, 15
        %v885 = vand.u32 %v858, 15
        %v886 = vand.u32 %v859, 15
        %v887 = vand.u32 %v860, 15
        %v888 = vand.u32 %v861, 15
        %v889 = vand.u32 %v862, 15
        %v890 = vand.u32 %v863, 15
        %v891 = vand.u32 %v864, 15
        %vm892 = vcmp.le.s32.totalorder %v883, %v884
        %vm893 = vcmp.le.s32.totalorder %v883, %v885
        %vm894 = vcmp.le.s32.totalorder %v883, %v886
        %vm895 = vcmp.le.s32.totalorder %v883, %v887
        %vm896 = vcmp.le.s32.totalorder %v883, %v888
        %vm897 = vcmp.le.s32.totalorder %v883, %v889
        %vm898 = vcmp.le.s32.totalorder %v883, %v890
        %vm899 = vcmp.le.s32.totalorder %v883, %v891
        %vm900 = vmand %vm875, %vm892
        %vm901 = vmand %vm876, %vm893
        %vm902 = vmand %vm877, %vm894
        %vm903 = vmand %vm878, %vm895
        %vm904 = vmand %vm879, %vm896
        %vm905 = vmand %vm880, %vm897
        %vm906 = vmand %vm881, %vm898
        %vm907 = vmand %vm882, %vm899
        %v908 = vsel %vm900, %v818, -1e+30
        %v909 = vsel %vm901, %v823, -1e+30
        %v910 = vsel %vm902, %v828, -1e+30
        %v911 = vsel %vm903, %v833, -1e+30
        %v912 = vsel %vm904, %v838, -1e+30
        %v913 = vsel %vm905, %v843, -1e+30
        %v914 = vsel %vm906, %v848, -1e+30
        %v915 = vsel %vm907, %v853, -1e+30
        %vm916 = vcmask 523264
        %v917 = vsel %vm916, %v908, -inf
        %918 = vmax.xlane.f32.xlu0 %v917
        %v919 = vpop.xlane.xlu0 %918
        %v920 = vsel %vm916, %v909, -inf
        %921 = vmax.xlane.f32.xlu0 %v920
        %v922 = vpop.xlane.xlu0 %921
        %v923 = vsel %vm916, %v910, -inf
        %924 = vmax.xlane.f32.xlu0 %v923
        %v925 = vpop.xlane.xlu0 %924
        %v926 = vsel %vm916, %v911, -inf
        %927 = vmax.xlane.f32.xlu0 %v926
        %v928 = vpop.xlane.xlu0 %927
        %v929 = vsel %vm916, %v912, -inf
        %930 = vmax.xlane.f32.xlu0 %v929
        %v931 = vpop.xlane.xlu0 %930
        %v932 = vsel %vm916, %v913, -inf
        %933 = vmax.xlane.f32.xlu0 %v932
        %v934 = vpop.xlane.xlu0 %933
        %v935 = vsel %vm916, %v914, -inf
        %936 = vmax.xlane.f32.xlu0 %v935
        %v937 = vpop.xlane.xlu0 %936
        %v938 = vsel %vm916, %v915, -inf
        %939 = vmax.xlane.f32.xlu0 %v938
        %v940 = vpop.xlane.xlu0 %939
        %v941 = vsub.f32 %v908, %v919
        %v942 = vsub.f32 %v909, %v922
        %v943 = vsub.f32 %v910, %v925
        %v944 = vsub.f32 %v911, %v928
        %v945 = vsub.f32 %v912, %v931
        %v946 = vsub.f32 %v913, %v934
        %v947 = vsub.f32 %v914, %v937
        %v948 = vsub.f32 %v915, %v940
        %v949 = vmul.f32 %v941, 1.442695
        %v950 = vpow.pop %v949
        %v951 = vmul.f32 %v942, 1.442695
        %v952 = vpow.pop %v951
        %v953 = vmul.f32 %v943, 1.442695
        %v954 = vpow.pop %v953
        %v955 = vmul.f32 %v944, 1.442695
        %v956 = vpow.pop %v955
        %v957 = vmul.f32 %v945, 1.442695
        %v958 = vpow.pop %v957
        %v959 = vmul.f32 %v946, 1.442695
        %v960 = vpow.pop %v959
        %v961 = vmul.f32 %v947, 1.442695
        %v962 = vpow.pop %v961
        %v963 = vmul.f32 %v948, 1.442695
        %v964 = vpow.pop %v963
        %v965 = vsel %vm916, %v950, 0.0
        %966 = vadd.xlane.f32.xlu0 %v965
        %v967 = vpop.xlane.xlu0 %966
        %v968 = vsel %vm916, %v952, 0.0
        %969 = vadd.xlane.f32.xlu0 %v968
        %v970 = vpop.xlane.xlu0 %969
        %v971 = vsel %vm916, %v954, 0.0
        %972 = vadd.xlane.f32.xlu0 %v971
        %v973 = vpop.xlane.xlu0 %972
        %v974 = vsel %vm916, %v956, 0.0
        %975 = vadd.xlane.f32.xlu0 %v974
        %v976 = vpop.xlane.xlu0 %975
        %v977 = vsel %vm916, %v958, 0.0
        %978 = vadd.xlane.f32.xlu0 %v977
        %v979 = vpop.xlane.xlu0 %978
        %v980 = vsel %vm916, %v960, 0.0
        %981 = vadd.xlane.f32.xlu0 %v980
        %v982 = vpop.xlane.xlu0 %981
        %v983 = vsel %vm916, %v962, 0.0
        %984 = vadd.xlane.f32.xlu0 %v983
        %v985 = vpop.xlane.xlu0 %984
        %v986 = vsel %vm916, %v964, 0.0
        %987 = vadd.xlane.f32.xlu0 %v986
        %v988 = vpop.xlane.xlu0 %987
        %v989 = vrcp.pop %v967
        %v990 = vmul.f32 %v950, %v989
        %v991 = vrcp.pop %v970
        %v992 = vmul.f32 %v952, %v991
        %v993 = vrcp.pop %v973
        %v994 = vmul.f32 %v954, %v993
        %v995 = vrcp.pop %v976
        %v996 = vmul.f32 %v956, %v995
        %v997 = vrcp.pop %v979
        %v998 = vmul.f32 %v958, %v997
        %v999 = vrcp.pop %v982
        %v1000 = vmul.f32 %v960, %v999
        %v1001 = vrcp.pop %v985
        %v1002 = vmul.f32 %v962, %v1001
        %v1003 = vrcp.pop %v988
        %v1004 = vmul.f32 %v964, %v1003
        %v1006 = vsel %vm916, %v990, 0
        %v1009 = vsel %vm916, %v992, 0
        %v1012 = vsel %vm916, %v994, 0
        %v1015 = vsel %vm916, %v996, 0
        %v1018 = vsel %vm916, %v998, 0
        %v1021 = vsel %vm916, %v1000, 0
        %v1024 = vsel %vm916, %v1002, 0
        %v1027 = vsel %vm916, %v1004, 0
        %1029 = vmatprep.subr.mxu0 0.0
        %1030 = vmatpush1.msra.mxu0 0.0
        %1031 = vmatprep.subr.mxu0 0.0
        %1032 = vmatpush1.msra.mxu0 0.0
        %1033 = vmatprep.subr.mxu0 0.0
        %1034 = vmatpush1.msra.mxu0 0.0
        %1035 = vmatprep.subr.mxu0 0.0
        %1036 = vmatpush1.msra.mxu0 0.0
        %1037 = vmatprep.subr.mxu0 0.0
        %1038 = vmatpush1.msra.mxu0 0.0
        %1039 = vmatprep.subr.mxu0 0.0
        %1040 = vmatpush1.msra.mxu0 0.0
        %1041 = vmatprep.subr.mxu0 0.0
        %1042 = vmatpush1.msra.mxu0 0.0
        %1043 = vmatprep.subr.mxu0 0.0
        %1044 = vmatpush1.msra.mxu0 0.0
        %1045 = vmatprep.subr.mxu0 0.0
        %1046 = vmatpush1.msra.mxu0 %v715
        %1047 = vmatprep.subr.mxu0 0.0
        %1048 = vmatpush1.msra.mxu0 %v713
        %1049 = vmatprep.subr.mxu0 0.0
        %1050 = vmatpush1.msra.mxu0 %v709
        %1051 = vmatprep.subr.mxu0 0.0
        %1052 = vmatpush1.msra.mxu0 %v707
        %1053 = vmatprep.subr.mxu0 0.0
        %1054 = vmatpush1.msra.mxu0 %v703
        %1055 = vmatprep.subr.mxu0 0.0
        %1056 = vmatpush1.msra.mxu0 %v701
        %1057 = vmatprep.subr.mxu0 0.0
        %1058 = vmatpush1.msra.mxu0 %v667
        %1059 = vmatprep.subr.mxu0 0.0
        %1060 = vmatpush1.msra.mxu0 %v662
        %1061 = vmatprep.subr.mxu0 0.0
        %1062 = vmatpush2.msra.mxu0 0.0
        %1063 = vmatprep.subr.mxu0 0.0
        %1064 = vmatpush2.msra.mxu0 0.0
        %1065 = vmatprep.subr.mxu0 0.0
        %1066 = vmatpush2.msra.mxu0 0.0
        %1067 = vmatprep.subr.mxu0 0.0
        %1068 = vmatpush2.msra.mxu0 0.0
        %1069 = vmatprep.subr.mxu0 0.0
        %1070 = vmatpush2.msra.mxu0 0.0
        %1071 = vmatprep.subr.mxu0 0.0
        %1072 = vmatpush2.msra.mxu0 0.0
        %1073 = vmatprep.subr.mxu0 0.0
        %1074 = vmatpush2.msra.mxu0 0.0
        %1075 = vmatprep.subr.mxu0 0.0
        %1076 = vmatpush2.msra.mxu0 0.0
        %1077 = vmatprep.subr.mxu0 0.0
        %1078 = vmatpush2.msra.mxu0 0.0
        %1079 = vmatprep.subr.mxu0 0.0
        %1080 = vmatpush2.msra.mxu0 0.0
        %1081 = vmatprep.subr.mxu0 0.0
        %1082 = vmatpush2.msra.mxu0 0.0
        %1083 = vmatprep.subr.mxu0 0.0
        %1084 = vmatpush2.msra.mxu0 0.0
        %1085 = vmatprep.subr.mxu0 0.0
        %1086 = vmatpush2.msra.mxu0 0.0
        %1087 = vmatprep.subr.mxu0 0.0
        %1088 = vmatpush2.msra.mxu0 0.0
        %1089 = vmatprep.subr.mxu0 0.0
        %1090 = vmatpush2.msra.mxu0 0.0
        %1091 = vmatprep.subr.mxu0 0.0
        %1092 = vmatpush2.msra.mxu0 0.0
        %1093 = vmatprep.mubr.f32.mxu0 0.0
        %1094 = vmatmul.mubr.f32.gmra.mxu0 %v1006
        %v1095 = vpop.f32.mrf.mxu0
        %v1096 = vadd.f32 0.0, %v1095
        %v1097 = vpop.f32.mrf.mxu0
        %1098 = vmatprep.mubr.f32.mxu0 0.0
        %1099 = vmatmul.mubr.f32.gmra.mxu0 %v1009
        %v1100 = vpop.f32.mrf.mxu0
        %v1101 = vadd.f32 0.0, %v1100
        %v1102 = vpop.f32.mrf.mxu0
        %1103 = vmatprep.mubr.f32.mxu0 0.0
        %1104 = vmatmul.mubr.f32.gmra.mxu0 %v1012
        %v1105 = vpop.f32.mrf.mxu0
        %v1106 = vadd.f32 0.0, %v1105
        %v1107 = vpop.f32.mrf.mxu0
        %1108 = vmatprep.mubr.f32.mxu0 0.0
        %1109 = vmatmul.mubr.f32.gmra.mxu0 %v1015
        %v1110 = vpop.f32.mrf.mxu0
        %v1111 = vadd.f32 0.0, %v1110
        %v1112 = vpop.f32.mrf.mxu0
        %1113 = vmatprep.mubr.f32.mxu0 0.0
        %1114 = vmatmul.mubr.f32.gmra.mxu0 %v1018
        %v1115 = vpop.f32.mrf.mxu0
        %v1116 = vadd.f32 0.0, %v1115
        %v1117 = vpop.f32.mrf.mxu0
        %1118 = vmatprep.mubr.f32.mxu0 0.0
        %1119 = vmatmul.mubr.f32.gmra.mxu0 %v1021
        %v1120 = vpop.f32.mrf.mxu0
        %v1121 = vadd.f32 0.0, %v1120
        %v1122 = vpop.f32.mrf.mxu0
        %1123 = vmatprep.mubr.f32.mxu0 0.0
        %1124 = vmatmul.mubr.f32.gmra.mxu0 %v1024
        %v1125 = vpop.f32.mrf.mxu0
        %v1126 = vadd.f32 0.0, %v1125
        %v1127 = vpop.f32.mrf.mxu0
        %1128 = vmatprep.mubr.f32.mxu0 0.0
        %1129 = vmatmul.mubr.f32.gmra.mxu0 %v1027
        %v1130 = vpop.f32.mrf.mxu0
        %v1131 = vadd.f32 0.0, %v1130
        %v1132 = vpop.f32.mrf.mxu0
        %1133 = vdwg.mxu0
        %1136 = vrot.lane.b32.xlu0 %v1106, 32
        %v1137 = vpop.permute.xlu0 %1136
        %1138 = vrot.lane.b32.xlu0 %v1111, 32
        %v1139 = vpop.permute.xlu0 %1138
        %1144 = vrot.lane.b32.xlu0 %v1116, 64
        %v1145 = vpop.permute.xlu0 %1144
        %1146 = vrot.lane.b32.xlu0 %v1121, 64
        %v1147 = vpop.permute.xlu0 %1146
        %1152 = vrot.lane.b32.xlu0 %v1126, 96
        %v1153 = vpop.permute.xlu0 %1152
        %1154 = vrot.lane.b32.xlu0 %v1131, 96
        %v1155 = vpop.permute.xlu0 %1154
        %v1158 = vsel %vm718, %v1096, %v1137
        %v1159 = vsel %vm718, %v1101, %v1139
        %v1160 = vsel %vm916, %v1158, %v1145
        %v1161 = vsel %vm916, %v1159, %v1147
        %vm1162 = vcmask 785408
        %v1163 = vsel %vm1162, %v1160, %v1153
        %v1164 = vsel %vm1162, %v1161, %v1155
        %v1165 = vld [vmem:[%s4] sm:$0xff]
        %v1166 = vld [vmem:[%s4 + $0x8] sm:$0xff]
        %v1167 = vld [vmem:[%s4 + $0x10] sm:$0xff]
        %v1168 = vld [vmem:[%s4 + $0x18] sm:$0xff]
        %v1169 = vld [vmem:[%s4 + $0x20] sm:$0xff]
        %v1170 = vld [vmem:[%s4 + $0x28] sm:$0xff]
        %v1171 = vld [vmem:[%s4 + $0x30] sm:$0xff]
        %v1172 = vld [vmem:[%s4 + $0x38] sm:$0xff]
        %v1173 = vld [vmem:[%s4 + $0x40] sm:$0xff]
        %v1174 = vld [vmem:[%s4 + $0x48] sm:$0xff]
        %v1175 = vld [vmem:[%s4 + $0x50] sm:$0xff]
        %v1176 = vld [vmem:[%s4 + $0x58] sm:$0xff]
        %v1177 = vld [vmem:[%s4 + $0x60] sm:$0xff]
        %v1178 = vld [vmem:[%s4 + $0x68] sm:$0xff]
        %v1179 = vld [vmem:[%s4 + $0x70] sm:$0xff]
        %v1180 = vld [vmem:[%s4 + $0x78] sm:$0xff]
        %1181 = vmatprep.subr.mxu0 0.0
        %1182 = vmatpush1.msra.mxu0 %v1180
        %1183 = vmatprep.subr.mxu0 0.0
        %1184 = vmatpush1.msra.mxu0 %v1179
        %1185 = vmatprep.subr.mxu0 0.0
        %1186 = vmatpush1.msra.mxu0 %v1178
        %1187 = vmatprep.subr.mxu0 0.0
        %1188 = vmatpush1.msra.mxu0 %v1177
        %1189 = vmatprep.subr.mxu0 0.0
        %1190 = vmatpush1.msra.mxu0 %v1176
        %1191 = vmatprep.subr.mxu0 0.0
        %1192 = vmatpush1.msra.mxu0 %v1175
        %1193 = vmatprep.subr.mxu0 0.0
        %1194 = vmatpush1.msra.mxu0 %v1174
        %1195 = vmatprep.subr.mxu0 0.0
        %1196 = vmatpush1.msra.mxu0 %v1173
        %1197 = vmatprep.subr.mxu0 0.0
        %1198 = vmatpush1.msra.mxu0 %v1172
        %1199 = vmatprep.subr.mxu0 0.0
        %1200 = vmatpush1.msra.mxu0 %v1171
        %1201 = vmatprep.subr.mxu0 0.0
        %1202 = vmatpush1.msra.mxu0 %v1170
        %1203 = vmatprep.subr.mxu0 0.0
        %1204 = vmatpush1.msra.mxu0 %v1169
        %1205 = vmatprep.subr.mxu0 0.0
        %1206 = vmatpush1.msra.mxu0 %v1168
        %1207 = vmatprep.subr.mxu0 0.0
        %1208 = vmatpush1.msra.mxu0 %v1167
        %1209 = vmatprep.subr.mxu0 0.0
        %1210 = vmatpush1.msra.mxu0 %v1166
        %1211 = vmatprep.subr.mxu0 0.0
        %1212 = vmatpush1.msra.mxu0 %v1165
        %1213 = vmatprep.subr.mxu0 0.0
        %1214 = vmatpush2.msra.mxu0 0.0
        %1215 = vmatprep.subr.mxu0 0.0
        %1216 = vmatpush2.msra.mxu0 0.0
        %1217 = vmatprep.subr.mxu0 0.0
        %1218 = vmatpush2.msra.mxu0 0.0
        %1219 = vmatprep.subr.mxu0 0.0
        %1220 = vmatpush2.msra.mxu0 0.0
        %1221 = vmatprep.subr.mxu0 0.0
        %1222 = vmatpush2.msra.mxu0 0.0
        %1223 = vmatprep.subr.mxu0 0.0
        %1224 = vmatpush2.msra.mxu0 0.0
        %1225 = vmatprep.subr.mxu0 0.0
        %1226 = vmatpush2.msra.mxu0 0.0
        %1227 = vmatprep.subr.mxu0 0.0
        %1228 = vmatpush2.msra.mxu0 0.0
        %1229 = vmatprep.subr.mxu0 0.0
        %1230 = vmatpush2.msra.mxu0 0.0
        %1231 = vmatprep.subr.mxu0 0.0
        %1232 = vmatpush2.msra.mxu0 0.0
        %1233 = vmatprep.subr.mxu0 0.0
        %1234 = vmatpush2.msra.mxu0 0.0
        %1235 = vmatprep.subr.mxu0 0.0
        %1236 = vmatpush2.msra.mxu0 0.0
        %1237 = vmatprep.subr.mxu0 0.0
        %1238 = vmatpush2.msra.mxu0 0.0
        %1239 = vmatprep.subr.mxu0 0.0
        %1240 = vmatpush2.msra.mxu0 0.0
        %1241 = vmatprep.subr.mxu0 0.0
        %1242 = vmatpush2.msra.mxu0 0.0
        %1243 = vmatprep.subr.mxu0 0.0
        %1244 = vmatpush2.msra.mxu0 0.0
        %1245 = vmatprep.mubr.f32.mxu0 0.0
        %1246 = vmatmul.mubr.f32.gmra.mxu0 %v1163
        %v1247 = vpop.f32.mrf.mxu0
        %v1248 = vadd.f32 0.0, %v1247
        %v1249 = vpop.f32.mrf.mxu0
        %1250 = vmatprep.mubr.f32.mxu0 0.0
        %1251 = vmatmul.mubr.f32.gmra.mxu0 %v1164
        %v1252 = vpop.f32.mrf.mxu0
        %v1253 = vadd.f32 0.0, %v1252
        %v1254 = vpop.f32.mrf.mxu0
        %1255 = vdwg.mxu0
        %v1256 = vadd.f32 %v427, %v1248
        %v1257 = vadd.f32 %v428, %v1253
        %1258 = vadd.xlane.f32.xlu0 %v1256
        %v1259 = vpop.xlane.xlu0 %1258
        %1260 = vadd.xlane.f32.xlu0 %v1257
        %v1261 = vpop.xlane.xlu0 %1260
        %v1262 = vmul.f32 %v1259, %v433
        %v1263 = vmul.f32 %v1261, %v433
        %v1264 = vsub.f32 %v1256, %v1262
        %v1265 = vsub.f32 %v1257, %v1263
        %v1266 = vmul.f32 %v1264, %v1264
        %v1267 = vmul.f32 %v1265, %v1265
        %1268 = vadd.xlane.f32.xlu0 %v1266
        %v1269 = vpop.xlane.xlu0 %1268
        %1270 = vadd.xlane.f32.xlu0 %v1267
        %v1271 = vpop.xlane.xlu0 %1270
        %v1272 = vmul.f32 %v1269, %v433
        %v1273 = vmul.f32 %v1271, %v433
        %v1274 = vadd.f32 %v1272, 1e-05
        %v1275 = vadd.f32 %v1273, 1e-05
        %v1276 = vrsqrt.pop %v1274
        %v1277 = vrsqrt.pop %v1275
        %v1278 = vmul.f32 %v1264, %v1276
        %v1279 = vmul.f32 %v1265, %v1277
        %v1280 = vld [vmem:[%s5] sm:$0x1]
        %v1282 = vlaneseq
        %v1283 = vshrl.u32 %v1282, 7
        %v1284 = vsub.s32 0, %v1283
        %v1285 = vrot.slane %v1280, %v1284
        %v1287 = vmul.f32 %v1278, %v1285
        %v1288 = vmul.f32 %v1279, %v1285
        %v1289 = vld [vmem:[%s6] sm:$0x1]
        %v1291 = vlaneseq
        %v1292 = vshrl.u32 %v1291, 7
        %v1293 = vsub.s32 0, %v1292
        %v1294 = vrot.slane %v1289, %v1293
        %v1296 = vadd.f32 %v1287, %v1294
        %v1297 = vadd.f32 %v1288, %v1294
        %v1298 = vld [vmem:[%s7] sm:$0xff]
        %v1299 = vld [vmem:[%s7 + $0x8] sm:$0xff]
        %v1300 = vld [vmem:[%s7 + $0x10] sm:$0xff]
        %v1301 = vld [vmem:[%s7 + $0x18] sm:$0xff]
        %v1302 = vld [vmem:[%s7 + $0x20] sm:$0xff]
        %v1303 = vld [vmem:[%s7 + $0x28] sm:$0xff]
        %v1304 = vld [vmem:[%s7 + $0x30] sm:$0xff]
        %v1305 = vld [vmem:[%s7 + $0x38] sm:$0xff]
        %v1306 = vld [vmem:[%s7 + $0x40] sm:$0xff]
        %v1307 = vld [vmem:[%s7 + $0x48] sm:$0xff]
        %v1308 = vld [vmem:[%s7 + $0x50] sm:$0xff]
        %v1309 = vld [vmem:[%s7 + $0x58] sm:$0xff]
        %v1310 = vld [vmem:[%s7 + $0x60] sm:$0xff]
        %v1311 = vld [vmem:[%s7 + $0x68] sm:$0xff]
        %v1312 = vld [vmem:[%s7 + $0x70] sm:$0xff]
        %v1313 = vld [vmem:[%s7 + $0x78] sm:$0xff]
        %v1314 = vld [vmem:[%s8] sm:$0x1]
        %v1316 = vlaneseq
        %v1317 = vshrl.u32 %v1316, 7
        %v1318 = vsub.s32 0, %v1317
        %v1319 = vrot.slane %v1314, %v1318
        %1321 = vmatprep.subr.mxu0 0.0
        %1322 = vmatpush1.msra.mxu0 %v1313
        %1323 = vmatprep.subr.mxu0 0.0
        %1324 = vmatpush1.msra.mxu0 %v1312
        %1325 = vmatprep.subr.mxu0 0.0
        %1326 = vmatpush1.msra.mxu0 %v1311
        %1327 = vmatprep.subr.mxu0 0.0
        %1328 = vmatpush1.msra.mxu0 %v1310
        %1329 = vmatprep.subr.mxu0 0.0
        %1330 = vmatpush1.msra.mxu0 %v1309
        %1331 = vmatprep.subr.mxu0 0.0
        %1332 = vmatpush1.msra.mxu0 %v1308
        %1333 = vmatprep.subr.mxu0 0.0
        %1334 = vmatpush1.msra.mxu0 %v1307
        %1335 = vmatprep.subr.mxu0 0.0
        %1336 = vmatpush1.msra.mxu0 %v1306
        %1337 = vmatprep.subr.mxu0 0.0
        %1338 = vmatpush1.msra.mxu0 %v1305
        %1339 = vmatprep.subr.mxu0 0.0
        %1340 = vmatpush1.msra.mxu0 %v1304
        %1341 = vmatprep.subr.mxu0 0.0
        %1342 = vmatpush1.msra.mxu0 %v1303
        %1343 = vmatprep.subr.mxu0 0.0
        %1344 = vmatpush1.msra.mxu0 %v1302
        %1345 = vmatprep.subr.mxu0 0.0
        %1346 = vmatpush1.msra.mxu0 %v1301
        %1347 = vmatprep.subr.mxu0 0.0
        %1348 = vmatpush1.msra.mxu0 %v1300
        %1349 = vmatprep.subr.mxu0 0.0
        %1350 = vmatpush1.msra.mxu0 %v1299
        %1351 = vmatprep.subr.mxu0 0.0
        %1352 = vmatpush1.msra.mxu0 %v1298
        %1353 = vmatprep.subr.mxu0 0.0
        %1354 = vmatpush2.msra.mxu0 0.0
        %1355 = vmatprep.subr.mxu0 0.0
        %1356 = vmatpush2.msra.mxu0 0.0
        %1357 = vmatprep.subr.mxu0 0.0
        %1358 = vmatpush2.msra.mxu0 0.0
        %1359 = vmatprep.subr.mxu0 0.0
        %1360 = vmatpush2.msra.mxu0 0.0
        %1361 = vmatprep.subr.mxu0 0.0
        %1362 = vmatpush2.msra.mxu0 0.0
        %1363 = vmatprep.subr.mxu0 0.0
        %1364 = vmatpush2.msra.mxu0 0.0
        %1365 = vmatprep.subr.mxu0 0.0
        %1366 = vmatpush2.msra.mxu0 0.0
        %1367 = vmatprep.subr.mxu0 0.0
        %1368 = vmatpush2.msra.mxu0 0.0
        %1369 = vmatprep.subr.mxu0 0.0
        %1370 = vmatpush2.msra.mxu0 0.0
        %1371 = vmatprep.subr.mxu0 0.0
        %1372 = vmatpush2.msra.mxu0 0.0
        %1373 = vmatprep.subr.mxu0 0.0
        %1374 = vmatpush2.msra.mxu0 0.0
        %1375 = vmatprep.subr.mxu0 0.0
        %1376 = vmatpush2.msra.mxu0 0.0
        %1377 = vmatprep.subr.mxu0 0.0
        %1378 = vmatpush2.msra.mxu0 0.0
        %1379 = vmatprep.subr.mxu0 0.0
        %1380 = vmatpush2.msra.mxu0 0.0
        %1381 = vmatprep.subr.mxu0 0.0
        %1382 = vmatpush2.msra.mxu0 0.0
        %1383 = vmatprep.subr.mxu0 0.0
        %1384 = vmatpush2.msra.mxu0 0.0
        %1385 = vmatprep.mubr.f32.mxu0 0.0
        %1386 = vmatmul.mubr.f32.gmra.mxu0 %v1296
        %v1387 = vpop.f32.mrf.mxu0
        %v1388 = vadd.f32 %v1319, %v1387
        %v1389 = vpop.f32.mrf.mxu0
        %1390 = vmatprep.mubr.f32.mxu0 0.0
        %1391 = vmatmul.mubr.f32.gmra.mxu0 %v1297
        %v1392 = vpop.f32.mrf.mxu0
        %v1393 = vadd.f32 %v1319, %v1392
        %v1394 = vpop.f32.mrf.mxu0
        %1395 = vdwg.mxu0
        %v1396 = vsel %vm916, %v1388, -inf
        %1397 = vmax.xlane.f32.xlu0 %v1396
        %v1398 = vpop.xlane.xlu0 %1397
        %v1399 = vsel %vm916, %v1393, -inf
        %1400 = vmax.xlane.f32.xlu0 %v1399
        %v1401 = vpop.xlane.xlu0 %1400
        %v1402 = vsub.f32 %v1388, %v1398
        %v1403 = vsub.f32 %v1393, %v1401
        %v1404 = vmul.f32 %v1402, 1.442695
        %v1405 = vpow.pop %v1404
        %v1406 = vmul.f32 %v1403, 1.442695
        %v1407 = vpow.pop %v1406
        %v1408 = vsel %vm916, %v1405, 0.0
        %1409 = vadd.xlane.f32.xlu0 %v1408
        %v1410 = vpop.xlane.xlu0 %1409
        %v1411 = vsel %vm916, %v1407, 0.0
        %1412 = vadd.xlane.f32.xlu0 %v1411
        %v1413 = vpop.xlane.xlu0 %1412
        %v1414 = vrcp.pop %v1410
        %v1415 = vmul.f32 %v1405, %v1414
        %v1416 = vrcp.pop %v1413
        %v1417 = vmul.f32 %v1407, %v1416
        %v1418 = vsel %vm916, %v1415, -inf
        %1419 = vmax.xlane.f32.xlu0 %v1418
        %v1420 = vpop.xlane.xlu0 %1419
        %v1421 = vsel %vm916, %v1417, -inf
        %1422 = vmax.xlane.f32.xlu0 %v1421
        %v1423 = vpop.xlane.xlu0 %1422
        %vm1424 = vcmp.eq.f32.partialorder %v1415, %v1420
        %vm1425 = vcmp.eq.f32.partialorder %v1417, %v1423
        %v1426 = vsel %vm1424, %v866, 64
        %v1427 = vsel %vm1425, %v866, 64
        %v1428 = vsel %vm916, %v1426, 2147483647
        %v1429 = vand.u32 %v1428, 65535
        %v1430 = vshra.s32 %v1428, 16
        %v1431 = vcvt.s32.f32 %v1429
        %v1432 = vcvt.s32.f32 %v1430
        %1433 = vmin.xlane.f32.xlu0 %v1432
        %v1434 = vpop.xlane.xlu0 %1433
        %vm1435 = vcmp.eq.f32.partialorder %v1432, %v1434
        %v1436 = vsel %vm1435, %v1431, inf
        %1437 = vmin.xlane.f32.xlu0 %v1436
        %v1438 = vpop.xlane.xlu0 %1437
        %v1439 = vcvt.f32.s32 %v1438
        %v1440 = vcvt.f32.s32 %v1434
        %v1441 = vshll.u32 %v1440, 16
        %v1442 = vadd.s32 %v1441, %v1439
        %v1443 = vsel %vm916, %v1427, 2147483647
        %v1444 = vand.u32 %v1443, 65535
        %v1445 = vshra.s32 %v1443, 16
        %v1446 = vcvt.s32.f32 %v1444
        %v1447 = vcvt.s32.f32 %v1445
        %1448 = vmin.xlane.f32.xlu0 %v1447
        %v1449 = vpop.xlane.xlu0 %1448
        %vm1450 = vcmp.eq.f32.partialorder %v1447, %v1449
        %v1451 = vsel %vm1450, %v1446, inf
        %1452 = vmin.xlane.f32.xlu0 %v1451
        %v1453 = vpop.xlane.xlu0 %1452
        %v1454 = vcvt.f32.s32 %v1453
        %v1455 = vcvt.f32.s32 %v1449
        %v1456 = vshll.u32 %v1455, 16
        %v1457 = vadd.s32 %v1456, %v1454
        %vm1458 = vcmp.eq.s32.totalorder %v866, %v1442
        %vm1459 = vcmp.eq.s32.totalorder %v866, %v1457
        %s1460 = sld [smem:[#allocation3]]
        %v1461 = vstv %s1460
        %v1462 = vmul.f32 %v1420, %v1461
        %v1463 = vmul.f32 %v1423, %v1461
        %v1464 = vsel %vm1458, %v1462, 0.0
        %v1465 = vsel %vm1459, %v1463, 0.0
        %v1466 = vadd.f32 %v1464, 0.0
        %v1467 = vadd.f32 %v1465, 0.0
        %v1468 = vsel %vm1458, -1e+30, %v1415
        %v1469 = vsel %vm1459, -1e+30, %v1417
        %v1470 = vsel %vm916, %v1468, -inf
        %1471 = vmax.xlane.f32.xlu0 %v1470
        %v1472 = vpop.xlane.xlu0 %1471
        %v1473 = vsel %vm916, %v1469, -inf
        %1474 = vmax.xlane.f32.xlu0 %v1473
        %v1475 = vpop.xlane.xlu0 %1474
        %vm1476 = vcmp.eq.f32.partialorder %v1468, %v1472
        %vm1477 = vcmp.eq.f32.partialorder %v1469, %v1475
        %v1478 = vsel %vm1476, %v866, 64
        %v1479 = vsel %vm1477, %v866, 64
        %v1480 = vsel %vm916, %v1478, 2147483647
        %v1481 = vand.u32 %v1480, 65535
        %v1482 = vshra.s32 %v1480, 16
        %v1483 = vcvt.s32.f32 %v1481
        %v1484 = vcvt.s32.f32 %v1482
        %1485 = vmin.xlane.f32.xlu0 %v1484
        %v1486 = vpop.xlane.xlu0 %1485
        %vm1487 = vcmp.eq.f32.partialorder %v1484, %v1486
        %v1488 = vsel %vm1487, %v1483, inf
        %1489 = vmin.xlane.f32.xlu0 %v1488
        %v1490 = vpop.xlane.xlu0 %1489
        %v1491 = vcvt.f32.s32 %v1490
        %v1492 = vcvt.f32.s32 %v1486
        %v1493 = vshll.u32 %v1492, 16
        %v1494 = vadd.s32 %v1493, %v1491
        %v1495 = vsel %vm916, %v1479, 2147483647
        %v1496 = vand.u32 %v1495, 65535
        %v1497 = vshra.s32 %v1495, 16
        %v1498 = vcvt.s32.f32 %v1496
        %v1499 = vcvt.s32.f32 %v1497
        %1500 = vmin.xlane.f32.xlu0 %v1499
        %v1501 = vpop.xlane.xlu0 %1500
        %vm1502 = vcmp.eq.f32.partialorder %v1499, %v1501
        %v1503 = vsel %vm1502, %v1498, inf
        %1504 = vmin.xlane.f32.xlu0 %v1503
        %v1505 = vpop.xlane.xlu0 %1504
        %v1506 = vcvt.f32.s32 %v1505
        %v1507 = vcvt.f32.s32 %v1501
        %v1508 = vshll.u32 %v1507, 16
        %v1509 = vadd.s32 %v1508, %v1506
        %vm1510 = vcmp.eq.s32.totalorder %v866, %v1494
        %vm1511 = vcmp.eq.s32.totalorder %v866, %v1509
        %s1512 = sld [smem:[#allocation3 + $0x1]]
        %v1513 = vstv %s1512
        %v1514 = vmul.f32 %v1472, %v1513
        %v1515 = vmul.f32 %v1475, %v1513
        %v1516 = vsel %vm1510, %v1514, 0.0
        %v1517 = vsel %vm1511, %v1515, 0.0
        %v1518 = vadd.f32 %v1466, %v1516
        %v1519 = vadd.f32 %v1467, %v1517
        %v1520 = vsel %vm1510, -1e+30, %v1468
        %v1521 = vsel %vm1511, -1e+30, %v1469
        %v1522 = vsel %vm916, %v1520, -inf
        %1523 = vmax.xlane.f32.xlu0 %v1522
        %v1524 = vpop.xlane.xlu0 %1523
        %v1525 = vsel %vm916, %v1521, -inf
        %1526 = vmax.xlane.f32.xlu0 %v1525
        %v1527 = vpop.xlane.xlu0 %1526
        %vm1528 = vcmp.eq.f32.partialorder %v1520, %v1524
        %vm1529 = vcmp.eq.f32.partialorder %v1521, %v1527
        %v1530 = vsel %vm1528, %v866, 64
        %v1531 = vsel %vm1529, %v866, 64
        %v1532 = vsel %vm916, %v1530, 2147483647
        %v1533 = vand.u32 %v1532, 65535
        %v1534 = vshra.s32 %v1532, 16
        %v1535 = vcvt.s32.f32 %v1533
        %v1536 = vcvt.s32.f32 %v1534
        %1537 = vmin.xlane.f32.xlu0 %v1536
        %v1538 = vpop.xlane.xlu0 %1537
        %vm1539 = vcmp.eq.f32.partialorder %v1536, %v1538
        %v1540 = vsel %vm1539, %v1535, inf
        %1541 = vmin.xlane.f32.xlu0 %v1540
        %v1542 = vpop.xlane.xlu0 %1541
        %v1543 = vcvt.f32.s32 %v1542
        %v1544 = vcvt.f32.s32 %v1538
        %v1545 = vshll.u32 %v1544, 16
        %v1546 = vadd.s32 %v1545, %v1543
        %v1547 = vsel %vm916, %v1531, 2147483647
        %v1548 = vand.u32 %v1547, 65535
        %v1549 = vshra.s32 %v1547, 16
        %v1550 = vcvt.s32.f32 %v1548
        %v1551 = vcvt.s32.f32 %v1549
        %1552 = vmin.xlane.f32.xlu0 %v1551
        %v1553 = vpop.xlane.xlu0 %1552
        %vm1554 = vcmp.eq.f32.partialorder %v1551, %v1553
        %v1555 = vsel %vm1554, %v1550, inf
        %1556 = vmin.xlane.f32.xlu0 %v1555
        %v1557 = vpop.xlane.xlu0 %1556
        %v1558 = vcvt.f32.s32 %v1557
        %v1559 = vcvt.f32.s32 %v1553
        %v1560 = vshll.u32 %v1559, 16
        %v1561 = vadd.s32 %v1560, %v1558
        %vm1562 = vcmp.eq.s32.totalorder %v866, %v1546
        %vm1563 = vcmp.eq.s32.totalorder %v866, %v1561
        %s1564 = sld [smem:[#allocation3 + $0x2]]
        %v1565 = vstv %s1564
        %v1566 = vmul.f32 %v1524, %v1565
        %v1567 = vmul.f32 %v1527, %v1565
        %v1568 = vsel %vm1562, %v1566, 0.0
        %v1569 = vsel %vm1563, %v1567, 0.0
        %v1570 = vadd.f32 %v1518, %v1568
        %v1571 = vadd.f32 %v1519, %v1569
        %v1572 = vsel %vm1562, -1e+30, %v1520
        %v1573 = vsel %vm1563, -1e+30, %v1521
        %v1574 = vsel %vm916, %v1572, -inf
        %1575 = vmax.xlane.f32.xlu0 %v1574
        %v1576 = vpop.xlane.xlu0 %1575
        %v1577 = vsel %vm916, %v1573, -inf
        %1578 = vmax.xlane.f32.xlu0 %v1577
        %v1579 = vpop.xlane.xlu0 %1578
        %vm1580 = vcmp.eq.f32.partialorder %v1572, %v1576
        %vm1581 = vcmp.eq.f32.partialorder %v1573, %v1579
        %v1582 = vsel %vm1580, %v866, 64
        %v1583 = vsel %vm1581, %v866, 64
        %v1584 = vsel %vm916, %v1582, 2147483647
        %v1585 = vand.u32 %v1584, 65535
        %v1586 = vshra.s32 %v1584, 16
        %v1587 = vcvt.s32.f32 %v1585
        %v1588 = vcvt.s32.f32 %v1586
        %1589 = vmin.xlane.f32.xlu0 %v1588
        %v1590 = vpop.xlane.xlu0 %1589
        %vm1591 = vcmp.eq.f32.partialorder %v1588, %v1590
        %v1592 = vsel %vm1591, %v1587, inf
        %1593 = vmin.xlane.f32.xlu0 %v1592
        %v1594 = vpop.xlane.xlu0 %1593
        %v1595 = vcvt.f32.s32 %v1594
        %v1596 = vcvt.f32.s32 %v1590
        %v1597 = vshll.u32 %v1596, 16
        %v1598 = vadd.s32 %v1597, %v1595
        %v1599 = vsel %vm916, %v1583, 2147483647
        %v1600 = vand.u32 %v1599, 65535
        %v1601 = vshra.s32 %v1599, 16
        %v1602 = vcvt.s32.f32 %v1600
        %v1603 = vcvt.s32.f32 %v1601
        %1604 = vmin.xlane.f32.xlu0 %v1603
        %v1605 = vpop.xlane.xlu0 %1604
        %vm1606 = vcmp.eq.f32.partialorder %v1603, %v1605
        %v1607 = vsel %vm1606, %v1602, inf
        %1608 = vmin.xlane.f32.xlu0 %v1607
        %v1609 = vpop.xlane.xlu0 %1608
        %v1610 = vcvt.f32.s32 %v1609
        %v1611 = vcvt.f32.s32 %v1605
        %v1612 = vshll.u32 %v1611, 16
        %v1613 = vadd.s32 %v1612, %v1610
        %vm1614 = vcmp.eq.s32.totalorder %v866, %v1598
        %vm1615 = vcmp.eq.s32.totalorder %v866, %v1613
        %s1616 = sld [smem:[#allocation3 + $0x3]]
        %v1617 = vstv %s1616
        %v1618 = vmul.f32 %v1576, %v1617
        %v1619 = vmul.f32 %v1579, %v1617
        %v1620 = vsel %vm1614, %v1618, 0.0
        %v1621 = vsel %vm1615, %v1619, 0.0
        %v1622 = vadd.f32 %v1570, %v1620
        %v1623 = vadd.f32 %v1571, %v1621
        %v1624 = vld [vmem:[%s9] sm:$0xff]
        %v1625 = vld [vmem:[%s9 + $0x8] sm:$0xff]
        %v1626 = vld [vmem:[%s9 + $0x10] sm:$0xff]
        %v1627 = vld [vmem:[%s9 + $0x18] sm:$0xff]
        %v1628 = vld [vmem:[%s9 + $0x20] sm:$0xff]
        %v1629 = vld [vmem:[%s9 + $0x28] sm:$0xff]
        %v1630 = vld [vmem:[%s9 + $0x30] sm:$0xff]
        %v1631 = vld [vmem:[%s9 + $0x38] sm:$0xff]
        %s1632 = sld [smem:[#allocation2]]
        %v1633 = vstv %s1632
        %v1635 = vsel %vm916, %v1622, 0
        %v1638 = vsel %vm916, %v1623, 0
        %1640 = vmatprep.subr.mxu0 0.0
        %1641 = vmatpush1.msra.mxu0 0.0
        %1642 = vmatprep.subr.mxu0 0.0
        %1643 = vmatpush1.msra.mxu0 0.0
        %1644 = vmatprep.subr.mxu0 0.0
        %1645 = vmatpush1.msra.mxu0 0.0
        %1646 = vmatprep.subr.mxu0 0.0
        %1647 = vmatpush1.msra.mxu0 0.0
        %1648 = vmatprep.subr.mxu0 0.0
        %1649 = vmatpush1.msra.mxu0 0.0
        %1650 = vmatprep.subr.mxu0 0.0
        %1651 = vmatpush1.msra.mxu0 0.0
        %1652 = vmatprep.subr.mxu0 0.0
        %1653 = vmatpush1.msra.mxu0 0.0
        %1654 = vmatprep.subr.mxu0 0.0
        %1655 = vmatpush1.msra.mxu0 0.0
        %1656 = vmatprep.subr.mxu0 0.0
        %1657 = vmatpush1.msra.mxu0 %v1631
        %1658 = vmatprep.subr.mxu0 0.0
        %1659 = vmatpush1.msra.mxu0 %v1630
        %1660 = vmatprep.subr.mxu0 0.0
        %1661 = vmatpush1.msra.mxu0 %v1629
        %1662 = vmatprep.subr.mxu0 0.0
        %1663 = vmatpush1.msra.mxu0 %v1628
        %1664 = vmatprep.subr.mxu0 0.0
        %1665 = vmatpush1.msra.mxu0 %v1627
        %1666 = vmatprep.subr.mxu0 0.0
        %1667 = vmatpush1.msra.mxu0 %v1626
        %1668 = vmatprep.subr.mxu0 0.0
        %1669 = vmatpush1.msra.mxu0 %v1625
        %1670 = vmatprep.subr.mxu0 0.0
        %1671 = vmatpush1.msra.mxu0 %v1624
        %1672 = vmatprep.subr.mxu0 0.0
        %1673 = vmatpush2.msra.mxu0 0.0
        %1674 = vmatprep.subr.mxu0 0.0
        %1675 = vmatpush2.msra.mxu0 0.0
        %1676 = vmatprep.subr.mxu0 0.0
        %1677 = vmatpush2.msra.mxu0 0.0
        %1678 = vmatprep.subr.mxu0 0.0
        %1679 = vmatpush2.msra.mxu0 0.0
        %1680 = vmatprep.subr.mxu0 0.0
        %1681 = vmatpush2.msra.mxu0 0.0
        %1682 = vmatprep.subr.mxu0 0.0
        %1683 = vmatpush2.msra.mxu0 0.0
        %1684 = vmatprep.subr.mxu0 0.0
        %1685 = vmatpush2.msra.mxu0 0.0
        %1686 = vmatprep.subr.mxu0 0.0
        %1687 = vmatpush2.msra.mxu0 0.0
        %1688 = vmatprep.subr.mxu0 0.0
        %1689 = vmatpush2.msra.mxu0 0.0
        %1690 = vmatprep.subr.mxu0 0.0
        %1691 = vmatpush2.msra.mxu0 0.0
        %1692 = vmatprep.subr.mxu0 0.0
        %1693 = vmatpush2.msra.mxu0 0.0
        %1694 = vmatprep.subr.mxu0 0.0
        %1695 = vmatpush2.msra.mxu0 0.0
        %1696 = vmatprep.subr.mxu0 0.0
        %1697 = vmatpush2.msra.mxu0 0.0
        %1698 = vmatprep.subr.mxu0 0.0
        %1699 = vmatpush2.msra.mxu0 0.0
        %1700 = vmatprep.subr.mxu0 0.0
        %1701 = vmatpush2.msra.mxu0 0.0
        %1702 = vmatprep.subr.mxu0 0.0
        %1703 = vmatpush2.msra.mxu0 0.0
        %1704 = vmatprep.mubr.f32.mxu0 0.0
        %1705 = vmatmul.mubr.f32.gmra.mxu0 %v1635
        %v1706 = vpop.f32.mrf.mxu0
        %v1707 = vadd.f32 %v1633, %v1706
        %v1708 = vpop.f32.mrf.mxu0
        %1709 = vmatprep.mubr.f32.mxu0 0.0
        %1710 = vmatmul.mubr.f32.gmra.mxu0 %v1638
        %v1711 = vpop.f32.mrf.mxu0
        %v1712 = vadd.f32 %v1633, %v1711
        %v1713 = vpop.f32.mrf.mxu0
        %1714 = vdwg.mxu0
        %v1715 = vmul.f32 %v1296, %v1707
        %v1716 = vmul.f32 %v1297, %v1712
        %v1717 = vadd.f32 %v1256, %v1715
        %v1718 = vadd.f32 %v1257, %v1716
        %1719 = vst [vmem:[%s421] sm:$0xff] %v1717
        %1720 = vst [vmem:[%s421 + $0x8] sm:$0xff] %v1718
        %s1721 = sand.u32 %s293, 1
        %s1722 = scalar_lea.sflag [#allocation4], %s1721
        %s1723 = sand.u32 %s293, 1
        %s1724 = smul.addr %s1723, 16
        %s1725 = scalar_lea.vmem [#allocation6], %s1724
        // Predicated region
        $region73: #{rambutan_slice.1} parent=67 // pred_check
          %p1726 = pneg %p303
        $region74: #{rambutan_slice.1} parent=67 // pred_check_branch
          %1728 = sbr.rel (%p1726) target = $region76
        $region75: #{rambutan_slice.1} parent=67 // pred_region
          %s1730 = ssub.s32 256, 256
          %1731 = vsyncadd %s1722, %s1730
          %s1732 = smul.addr %s28, 2
          %s1733 = smul.addr %s1732, 128
          %s1734 = scalar_lea.hbm %s12, %s1733
          %s1735 = sshll.u32 %s1725, 4
          %s1736 = int_to_ptr.vmem [resolvable:$true] %s1735
          %1741 = dma.vmem_to_hbm [thread:$0]  %s1736, 256, %s1734, %s1722, 128, 128, 8
        $region76: #{rambutan_slice.1} parent=67 // pred_fallthru
          _
      $region68: #{rambutan_slice.1} parent=5 // pred_fallthru
        _
      %p1742 = scmp.le.s32.totalorder 2, %s23
      // Predicated region
      $region77: #{rambutan_slice.1} parent=5 // pred_check
        %p1743 = pneg %p1742
      $region78: #{rambutan_slice.1} parent=5 // pred_check_branch
        %1745 = sbr.rel (%p1743) target = $region80
      $region79: #{rambutan_slice.1} parent=5 // pred_region
        %s1746 = ssub.s32 %s23, 2
        // Predicated region
        $region81: #{rambutan_slice.1} parent=79 // pred_check
          %p1747 = pneg %p309
        $region82: #{rambutan_slice.1} parent=79 // pred_check_branch
          %1749 = sbr.rel (%p1747) target = $region84
        $region83: #{rambutan_slice.1} parent=79 // pred_region
          %s1750 = sand.u32 %s294, 1
          %s1751 = scalar_lea.sflag [#allocation4], %s1750
          %s1752 = sand.u32 %s294, 1
          %s1753 = smul.addr %s1752, 16
          %s1754 = scalar_lea.vmem [#allocation6], %s1753
          %1755 = dma.done %s1751, 256
        $region84: #{rambutan_slice.1} parent=79 // pred_fallthru
          _
      $region80: #{rambutan_slice.1} parent=5 // pred_fallthru
        _
    $region6: #{rambutan_slice.1} parent=1 // loop_footer
      %s27 = sadd.s32 1, %s23
    $region7: #{rambutan_slice.1} parent=1 // loop_footer_branch
      %22 = sbr.rel target = $region3
    $region8: #{rambutan_slice.1} parent=1 // loop_exit
      _
    %1756 = vsyncpa [#allocation4], 1
    %s1757 = scalar_lea.sflag [#allocation4], 1
    %1758 = vsyncpa %s1757, 1
    %1759 = vsyncpa [#allocation5], 1
    %s1760 = scalar_lea.sflag [#allocation5], 1
    %1761 = vsyncpa %s1760, 1

</llo_original>
